<compile_context>
chip_gen: v7x
topology: tpu7x:2x2x1
jax: 0.10.0
libtpu: 0.0.40
codegen_flags: <defaults>
</compile_context>

<pallas_src>
import functools

import jax
import jax.numpy as jnp
from jax import lax
from jax.experimental import pallas as pl
from jax.experimental.pallas import tpu as pltpu


def _pick_chunk_rows(hw, c4):
    """Largest divisor of H*W keeping per-chunk f32 temps small (~<=256 KiB)."""
    target = max(1, 65536 // max(c4, 1))
    if hw <= target:
        return hw
    best = 1
    d = 1
    while d * d <= hw:
        if hw % d == 0:
            lo, hi = d, hw // d
            if lo <= target and lo > best:
                best = lo
            if hi <= target and hi > best:
                best = hi
        d += 1
    return best


def _wav_unpack_kernel(x_ref, w_ref, b_ref, gamma_ref, beta_ref, agg_ref,
                       out_ref, acc_ref, *, H, W, K, C_in, C4, C_out,
                       num_groups, eps, chunk):
    # x_ref:  (1, Hp, Wp, C_in)  zero-padded NHWC tile, bf16
    # w_ref:  (K*K*C_in, C4)     conv weights, tap-major (kh, kw, c_in), bf16
    # b/gamma/beta_ref: (1, C4)  f32
    # agg_ref: (C4, C4)          constant block-diagonal GroupNorm aggregator, f32
    # out_ref: (1, H*W, C4)      4 IDWT phases packed on channels: (2*di+dj)*C_out + c
    # acc_ref: (H*W, C4) f32     VMEM scratch holding the conv output

    # ---- Conv2d as a single im2col matmul on the MXU (contraction = K*K*C_in).
    xp = x_ref[0]                                   # (Hp, Wp, C_in) bf16
    cols = []
    for kh in range(K):
        slab = xp[kh:kh + H]                        # leading-dim slice (cheap)
        for kw in range(K):
            cols.append(slab[:, kw:kw + W, :])      # (H, W, C_in)
    patches = jnp.concatenate(cols, axis=-1)        # (H, W, K*K*C_in), tap-major
    patches = patches.reshape(H * W, K * K * C_in)
    acc = jnp.dot(patches, w_ref[...],
                  preferred_element_type=jnp.float32)        # (H*W, C4) f32
    acc = acc + b_ref[...]                                    # conv bias

    # ---- GroupNorm statistics (biased variance), one tiny matmul reduces
    #      per-channel sums to per-group sums AND broadcasts them back.
    s = jnp.sum(acc, axis=0, keepdims=True)          # (1, C4)
    ss = jnp.sum(acc * acc, axis=0, keepdims=True)   # (1, C4)
    inv_n = 1.0 / float(H * W * (C4 // num_groups))
    mean = jnp.dot(s, agg_ref[...], preferred_element_type=jnp.float32) * inv_n
    ex2 = jnp.dot(ss, agg_ref[...], preferred_element_type=jnp.float32) * inv_n
    var = jnp.maximum(ex2 - mean * mean, 0.0)        # clamp single-pass variance
    scale = lax.rsqrt(var + eps) * gamma_ref[...]    # (1, C4)
    shift = beta_ref[...] - mean * scale             # (1, C4)

    acc_ref[...] = acc                               # park conv output in VMEM

    # ---- Epilogue: normalize + ELU + inverse Haar DWT, processed in row chunks
    #      so no (H*W, C4) f32 temporaries stay live in vector registers.
    n_chunks = (H * W) // chunk

    def body(ci, carry):
        start = pl.multiple_of(ci * chunk, chunk)
        a = acc_ref[pl.ds(start, chunk), :]                        # (chunk, C4)
        a = a * scale + shift                                      # GroupNorm affine
        a = jnp.where(a > 0, a, jnp.exp(jnp.minimum(a, 0.0)) - 1.0)  # ELU(alpha=1)
        ll = a[:, 0 * C_out:1 * C_out]
        lh = a[:, 1 * C_out:2 * C_out]
        hl = a[:, 2 * C_out:3 * C_out]
        hh = a[:, 3 * C_out:4 * C_out]
        e = 0.5 * (ll + lh)
        f = 0.5 * (ll - lh)
        g = 0.5 * (hl + hh)
        h = 0.5 * (hl - hh)
        # phases packed on channels (one dense store):
        #   [p00 | p01 | p10 | p11] -> channel index (2*di + dj)*C_out + c
        out_ref[0, pl.ds(start, chunk), :] = jnp.concatenate(
            [e + g, e - g, f + h, f - h], axis=-1)
        return carry

    lax.fori_loop(0, n_chunks, body, 0)


def wav_unpack2d_layer(x_nchw, weight, bias, gamma, beta, *, kernel_size,
                       num_groups=16, eps=1e-5):
    """[B, C_in, H, W] -> [B, C_out, 2H, 2W] with C_out = weight.shape[0] // 4."""
    B, C_in, H, W = x_nchw.shape
    C4 = weight.shape[0]
    assert C4 % 4 == 0 and C4 % num_groups == 0
    C_out = C4 // 4
    K = int(kernel_size)
    assert K % 2 == 1, "odd kernel_size expected (ConstantPad2d(k//2) keeps H, W)"
    p = K // 2
    Hp, Wp = H + 2 * p, W + 2 * p

    # NCHW -> padded NHWC in bf16 (pad fuses with the transpose+cast pass).
    x_nhwc = jnp.transpose(x_nchw, (0, 2, 3, 1)).astype(jnp.bfloat16)
    x_pad = jnp.pad(x_nhwc, ((0, 0), (p, p), (p, p), (0, 0)))

    # Conv weight (C4, C_in, K, K) -> (K*K*C_in, C4), matching im2col tap order.
    w2 = jnp.transpose(weight, (2, 3, 1, 0)).reshape(K * K * C_in, C4)
    w2 = w2.astype(jnp.bfloat16)
    b2 = bias.reshape(1, C4).astype(jnp.float32)
    g2 = gamma.reshape(1, C4).astype(jnp.float32)
    bt2 = beta.reshape(1, C4).astype(jnp.float32)

    # Constant block-diagonal GroupNorm aggregator: built once here instead of
    # being re-materialized from iota/compare on every grid step.
    cg = C4 // num_groups
    group_id = jnp.arange(C4, dtype=jnp.int32) // cg
    agg = (group_id[:, None] == group_id[None, :]).astype(jnp.float32)

    chunk = _pick_chunk_rows(H * W, C4)

    kernel = functools.partial(
        _wav_unpack_kernel, H=H, W=W, K=K, C_in=C_in, C4=C4, C_out=C_out,
        num_groups=num_groups, eps=float(eps), chunk=chunk)

    phases = pl.pallas_call(
        kernel,
        out_shape=jax.ShapeDtypeStruct((B, H * W, C4), jnp.float32),
        grid=(B,),
        in_specs=[
            pl.BlockSpec((1, Hp, Wp, C_in), lambda b: (b, 0, 0, 0)),
            pl.BlockSpec((K * K * C_in, C4), lambda b: (0, 0)),
            pl.BlockSpec((1, C4), lambda b: (0, 0)),
            pl.BlockSpec((1, C4), lambda b: (0, 0)),
            pl.BlockSpec((1, C4), lambda b: (0, 0)),
            pl.BlockSpec((C4, C4), lambda b: (0, 0)),
        ],
        out_specs=pl.BlockSpec((1, H * W, C4), lambda b: (b, 0, 0)),
        scratch_shapes=[pltpu.VMEM((H * W, C4), jnp.float32)],
        compiler_params=pltpu.CompilerParams(
            dimension_semantics=("parallel",),
            vmem_limit_bytes=48 * 1024 * 1024),
    )(x_pad, w2, b2, g2, bt2, agg)

    # Fold the phase->pixel interleave into the single NHWC->NCHW transpose the
    # public interface needs anyway (one pass over the 4x-sized output).
    ph = phases.reshape(B, H, W, 2, 2, C_out)          # (b, i, j, di, dj, c)
    out = jnp.transpose(ph, (0, 5, 1, 3, 2, 4))        # (b, c, i, di, j, dj)
    return out.reshape(B, C_out, 2 * H, 2 * W)


def _reference(x, weight, bias, gamma, beta, *, kernel_size, num_groups=16,
               eps=1e-5):
    """Pure-JAX f32 reference of the same forward pass."""
    B, C_in, H, W = x.shape
    C4 = weight.shape[0]
    C_out = C4 // 4
    p = kernel_size // 2
    xp = jnp.pad(x, ((0, 0), (0, 0), (p, p), (p, p)))
    y = lax.conv_general_dilated(xp, weight, (1, 1), "VALID",
                                 dimension_numbers=("NCHW", "OIHW", "NCHW"),
                                 precision=lax.Precision.HIGHEST)
    y = y + bias.reshape(1, C4, 1, 1)
    yg = y.reshape(B, num_groups, C4 // num_groups, H, W)
    mean = jnp.mean(yg, axis=(2, 3, 4), keepdims=True)
    var = jnp.var(yg, axis=(2, 3, 4), keepdims=True)
    y = ((yg - mean) / jnp.sqrt(var + eps)).reshape(B, C4, H, W)
    y = y * gamma.reshape(1, C4, 1, 1) + beta.reshape(1, C4, 1, 1)
    y = jnp.where(y > 0, y, jnp.exp(jnp.minimum(y, 0.0)) - 1.0)
    ll, lh, hl, hh = jnp.split(y, 4, axis=1)
    out = jnp.zeros((B, C_out, 2 * H, 2 * W), jnp.float32)
    out = out.at[:, :, 0::2, 0::2].set((ll + lh + hl + hh) * 0.5)
    out = out.at[:, :, 0::2, 1::2].set((ll + lh - hl - hh) * 0.5)
    out = out.at[:, :, 1::2, 0::2].set((ll - lh + hl - hh) * 0.5)
    out = out.at[:, :, 1::2, 1::2].set((ll - lh - hl + hh) * 0.5)
    return out


if __name__ == "__main__":
    B, C_in, H, W = 2, 4, 16, 16
    out_channels, K = 4, 3        # conv emits 4*out_channels = 16 channels (GroupNorm(16, 16))
    C4 = out_channels * 4

    key = jax.random.PRNGKey(0)
    kx, kw_, kb = jax.random.split(key, 3)
    x = jax.random.normal(kx, (B, C_in, H, W), dtype=jnp.float32)
    weight = jax.random.normal(kw_, (C4, C_in, K, K), dtype=jnp.float32) / jnp.sqrt(
        float(C_in * K * K))
    bias = 0.01 * jax.random.normal(kb, (C4,), dtype=jnp.float32)
    gamma = jnp.ones((C4,), jnp.float32)   # GroupNorm affine init (weight=1)
    beta = jnp.zeros((C4,), jnp.float32)   # GroupNorm affine init (bias=0)

    y = wav_unpack2d_layer(x, weight, bias, gamma, beta, kernel_size=K)
    y = jax.block_until_ready(y)
    assert y.shape == (B, out_channels, 2 * H, 2 * W), y.shape
    assert bool(jnp.isfinite(y).all())

    # Compare against the pure-JAX f32 reference (kernel matmul runs with bf16
    # inputs -> loose absolute tolerance on O(1)-scale outputs).
    ref = _reference(x, weight, bias, gamma, beta, kernel_size=K)
    max_err = float(jnp.max(jnp.abs(y - ref)))
    assert max_err < 1e-1, f"max abs err vs f32 reference: {max_err}"

    print("KERNEL_OK")
</pallas_src>

<mosaic_0001>
module attributes {stable_mosaic.version = 11 : i64} {
  func.func @_wav_unpack_kernel(%arg0: i32, %arg1: memref<1x18x18x4xbf16, #tpu.memory_space<vmem>>, %arg2: memref<36x16xbf16, #tpu.memory_space<vmem>>, %arg3: memref<1x16xf32, #tpu.memory_space<vmem>>, %arg4: memref<1x16xf32, #tpu.memory_space<vmem>>, %arg5: memref<1x16xf32, #tpu.memory_space<vmem>>, %arg6: memref<16x16xf32, #tpu.memory_space<vmem>>, %arg7: memref<1x256x16xf32, #tpu.memory_space<vmem>>, %arg8: memref<256x16xf32, #tpu.memory_space<vmem>>) attributes {dimension_semantics = [#tpu.dimension_semantics<parallel>], iteration_bounds = array<i64: 2>, scalar_prefetch = 0 : i64, scratch_operands = 1 : i64, tpu.core_type = #tpu.core_type<tc>, window_params = [{transform_indices = @transform_0, window_bounds = array<i64: 1, 18, 18, 4>}, {pipeline_mode = #tpu.pipeline_mode<synchronous>, transform_indices = @transform_1, window_bounds = array<i64: 36, 16>}, {pipeline_mode = #tpu.pipeline_mode<synchronous>, transform_indices = @transform_2, window_bounds = array<i64: 1, 16>}, {pipeline_mode = #tpu.pipeline_mode<synchronous>, transform_indices = @transform_3, window_bounds = array<i64: 1, 16>}, {pipeline_mode = #tpu.pipeline_mode<synchronous>, transform_indices = @transform_4, window_bounds = array<i64: 1, 16>}, {pipeline_mode = #tpu.pipeline_mode<synchronous>, transform_indices = @transform_5, window_bounds = array<i64: 16, 16>}, {transform_indices = @transform_6, window_bounds = array<i64: 1, 256, 16>}]} {
    %c0 = arith.constant 0 : index
    %c0_0 = arith.constant 0 : index
    %c0_1 = arith.constant 0 : index
    %c0_2 = arith.constant 0 : index
    %0 = vector.load %arg1[%c0, %c0_0, %c0_1, %c0_2] : memref<1x18x18x4xbf16, #tpu.memory_space<vmem>>, vector<1x18x18x4xbf16>
    %1 = vector.shape_cast %0 : vector<1x18x18x4xbf16> to vector<18x18x4xbf16>
    %2 = vector.extract_strided_slice %1 {offsets = [0, 0, 0], sizes = [16, 18, 4], strides = [1, 1, 1]} : vector<18x18x4xbf16> to vector<16x18x4xbf16>
    %3 = vector.extract_strided_slice %2 {offsets = [0, 0, 0], sizes = [16, 16, 4], strides = [1, 1, 1]} : vector<16x18x4xbf16> to vector<16x16x4xbf16>
    %4 = vector.extract_strided_slice %2 {offsets = [0, 1, 0], sizes = [16, 16, 4], strides = [1, 1, 1]} : vector<16x18x4xbf16> to vector<16x16x4xbf16>
    %5 = vector.extract_strided_slice %2 {offsets = [0, 2, 0], sizes = [16, 16, 4], strides = [1, 1, 1]} : vector<16x18x4xbf16> to vector<16x16x4xbf16>
    %6 = vector.extract_strided_slice %1 {offsets = [1, 0, 0], sizes = [16, 18, 4], strides = [1, 1, 1]} : vector<18x18x4xbf16> to vector<16x18x4xbf16>
    %7 = vector.extract_strided_slice %6 {offsets = [0, 0, 0], sizes = [16, 16, 4], strides = [1, 1, 1]} : vector<16x18x4xbf16> to vector<16x16x4xbf16>
    %8 = vector.extract_strided_slice %6 {offsets = [0, 1, 0], sizes = [16, 16, 4], strides = [1, 1, 1]} : vector<16x18x4xbf16> to vector<16x16x4xbf16>
    %9 = vector.extract_strided_slice %6 {offsets = [0, 2, 0], sizes = [16, 16, 4], strides = [1, 1, 1]} : vector<16x18x4xbf16> to vector<16x16x4xbf16>
    %10 = vector.extract_strided_slice %1 {offsets = [2, 0, 0], sizes = [16, 18, 4], strides = [1, 1, 1]} : vector<18x18x4xbf16> to vector<16x18x4xbf16>
    %11 = vector.extract_strided_slice %10 {offsets = [0, 0, 0], sizes = [16, 16, 4], strides = [1, 1, 1]} : vector<16x18x4xbf16> to vector<16x16x4xbf16>
    %12 = vector.extract_strided_slice %10 {offsets = [0, 1, 0], sizes = [16, 16, 4], strides = [1, 1, 1]} : vector<16x18x4xbf16> to vector<16x16x4xbf16>
    %13 = vector.extract_strided_slice %10 {offsets = [0, 2, 0], sizes = [16, 16, 4], strides = [1, 1, 1]} : vector<16x18x4xbf16> to vector<16x16x4xbf16>
    %14 = tpu.concatenate %3, %4, %5, %7, %8, %9, %11, %12, %13 in 2 : vector<16x16x4xbf16>, vector<16x16x4xbf16>, vector<16x16x4xbf16>, vector<16x16x4xbf16>, vector<16x16x4xbf16>, vector<16x16x4xbf16>, vector<16x16x4xbf16>, vector<16x16x4xbf16>, vector<16x16x4xbf16> -> vector<16x16x36xbf16>
    %15 = vector.shape_cast %14 : vector<16x16x36xbf16> to vector<256x36xbf16>
    %c0_3 = arith.constant 0 : index
    %c0_4 = arith.constant 0 : index
    %16 = vector.load %arg2[%c0_3, %c0_4] : memref<36x16xbf16, #tpu.memory_space<vmem>>, vector<36x16xbf16>
    %cst = arith.constant dense<0.000000e+00> : vector<256x16xf32>
    %17 = tpu.matmul %15, %16, %cst {dimension_numbers = #tpu.dot_dimension_numbers<[1], [0], [0], [1], [0, 0, 1, 1], [], []>} : vector<256x36xbf16>, vector<36x16xbf16>, vector<256x16xf32> -> vector<256x16xf32>
    %c0_5 = arith.constant 0 : index
    %c0_6 = arith.constant 0 : index
    %18 = vector.load %arg3[%c0_5, %c0_6] : memref<1x16xf32, #tpu.memory_space<vmem>>, vector<1x16xf32>
    %19 = vector.broadcast %18 : vector<1x16xf32> to vector<256x16xf32>
    %20 = arith.addf %17, %19 : vector<256x16xf32>
    %cst_7 = arith.constant dense<0.000000e+00> : vector<16xf32>
    %21 = vector.multi_reduction <add>, %20, %cst_7 [0] : vector<256x16xf32> to vector<16xf32>
    %22 = vector.shape_cast %21 : vector<16xf32> to vector<1x16xf32>
    %23 = arith.mulf %20, %20 : vector<256x16xf32>
    %cst_8 = arith.constant dense<0.000000e+00> : vector<16xf32>
    %24 = vector.multi_reduction <add>, %23, %cst_8 [0] : vector<256x16xf32> to vector<16xf32>
    %25 = vector.shape_cast %24 : vector<16xf32> to vector<1x16xf32>
    %c0_9 = arith.constant 0 : index
    %c0_10 = arith.constant 0 : index
    %26 = vector.load %arg6[%c0_9, %c0_10] : memref<16x16xf32, #tpu.memory_space<vmem>>, vector<16x16xf32>
    %cst_11 = arith.constant dense<0.000000e+00> : vector<1x16xf32>
    %27 = tpu.matmul %22, %26, %cst_11 {dimension_numbers = #tpu.dot_dimension_numbers<[1], [0], [0], [1], [0, 0, 1, 1], [], []>} : vector<1x16xf32>, vector<16x16xf32>, vector<1x16xf32> -> vector<1x16xf32>
    %cst_12 = arith.constant 3.906250e-03 : f32
    %28 = vector.broadcast %cst_12 : f32 to vector<1x16xf32>
    %29 = arith.mulf %27, %28 : vector<1x16xf32>
    %c0_13 = arith.constant 0 : index
    %c0_14 = arith.constant 0 : index
    %30 = vector.load %arg6[%c0_13, %c0_14] : memref<16x16xf32, #tpu.memory_space<vmem>>, vector<16x16xf32>
    %cst_15 = arith.constant dense<0.000000e+00> : vector<1x16xf32>
    %31 = tpu.matmul %25, %30, %cst_15 {dimension_numbers = #tpu.dot_dimension_numbers<[1], [0], [0], [1], [0, 0, 1, 1], [], []>} : vector<1x16xf32>, vector<16x16xf32>, vector<1x16xf32> -> vector<1x16xf32>
    %cst_16 = arith.constant 3.906250e-03 : f32
    %32 = vector.broadcast %cst_16 : f32 to vector<1x16xf32>
    %33 = arith.mulf %31, %32 : vector<1x16xf32>
    %34 = arith.mulf %29, %29 : vector<1x16xf32>
    %35 = arith.subf %33, %34 : vector<1x16xf32>
    %cst_17 = arith.constant 0.000000e+00 : f32
    %36 = vector.broadcast %cst_17 : f32 to vector<1x16xf32>
    %37 = arith.maximumf %35, %36 : vector<1x16xf32>
    %cst_18 = arith.constant 9.99999974E-6 : f32
    %38 = vector.broadcast %cst_18 : f32 to vector<1x16xf32>
    %39 = arith.addf %37, %38 : vector<1x16xf32>
    %40 = math.rsqrt %39 : vector<1x16xf32>
    %c0_19 = arith.constant 0 : index
    %c0_20 = arith.constant 0 : index
    %41 = vector.load %arg4[%c0_19, %c0_20] : memref<1x16xf32, #tpu.memory_space<vmem>>, vector<1x16xf32>
    %42 = arith.mulf %40, %41 : vector<1x16xf32>
    %c0_21 = arith.constant 0 : index
    %c0_22 = arith.constant 0 : index
    %43 = vector.load %arg5[%c0_21, %c0_22] : memref<1x16xf32, #tpu.memory_space<vmem>>, vector<1x16xf32>
    %44 = arith.mulf %29, %42 : vector<1x16xf32>
    %45 = arith.subf %43, %44 : vector<1x16xf32>
    %c0_23 = arith.constant 0 : index
    %c0_24 = arith.constant 0 : index
    %46 = vector.load %arg8[%c0_23, %c0_24] : memref<256x16xf32, #tpu.memory_space<vmem>>, vector<256x16xf32>
    tpu.vector_store %arg8[%c0_23, %c0_24], %20 {strides = array<i32>} : memref<256x16xf32, #tpu.memory_space<vmem>>, vector<256x16xf32>,
    %c0_i32 = arith.constant 0 : i32
    %c256_i32 = arith.constant 256 : i32
    %47 = arith.muli %c0_i32, %c256_i32 : i32
    %48 = tpu.assume_multiple %47, 256 : i32
    %49 = arith.index_cast %48 : i32 to index
    %c0_25 = arith.constant 0 : index
    %50 = vector.load %arg8[%49, %c0_25] : memref<256x16xf32, #tpu.memory_space<vmem>>, vector<256x16xf32>
    %51 = vector.broadcast %42 : vector<1x16xf32> to vector<256x16xf32>
    %52 = arith.mulf %50, %51 : vector<256x16xf32>
    %53 = vector.broadcast %45 : vector<1x16xf32> to vector<256x16xf32>
    %54 = arith.addf %52, %53 : vector<256x16xf32>
    %cst_26 = arith.constant 0.000000e+00 : f32
    %55 = vector.broadcast %cst_26 : f32 to vector<256x16xf32>
    %56 = arith.cmpf ogt, %54, %55 : vector<256x16xf32>
    %cst_27 = arith.constant 0.000000e+00 : f32
    %57 = vector.broadcast %cst_27 : f32 to vector<256x16xf32>
    %58 = arith.minimumf %54, %57 : vector<256x16xf32>
    %59 = math.exp %58 : vector<256x16xf32>
    %cst_28 = arith.constant 1.000000e+00 : f32
    %60 = vector.broadcast %cst_28 : f32 to vector<256x16xf32>
    %61 = arith.subf %59, %60 : vector<256x16xf32>
    %62 = arith.select %56, %54, %61 : vector<256x16xi1>, vector<256x16xf32>
    %63 = vector.extract_strided_slice %62 {offsets = [0, 0], sizes = [256, 4], strides = [1, 1]} : vector<256x16xf32> to vector<256x4xf32>
    %64 = vector.extract_strided_slice %62 {offsets = [0, 4], sizes = [256, 4], strides = [1, 1]} : vector<256x16xf32> to vector<256x4xf32>
    %65 = vector.extract_strided_slice %62 {offsets = [0, 8], sizes = [256, 4], strides = [1, 1]} : vector<256x16xf32> to vector<256x4xf32>
    %66 = vector.extract_strided_slice %62 {offsets = [0, 12], sizes = [256, 4], strides = [1, 1]} : vector<256x16xf32> to vector<256x4xf32>
    %67 = arith.addf %63, %64 : vector<256x4xf32>
    %cst_29 = arith.constant 5.000000e-01 : f32
    %68 = vector.broadcast %cst_29 : f32 to vector<256x4xf32>
    %69 = arith.mulf %68, %67 : vector<256x4xf32>
    %70 = arith.subf %63, %64 : vector<256x4xf32>
    %cst_30 = arith.constant 5.000000e-01 : f32
    %71 = vector.broadcast %cst_30 : f32 to vector<256x4xf32>
    %72 = arith.mulf %71, %70 : vector<256x4xf32>
    %73 = arith.addf %65, %66 : vector<256x4xf32>
    %cst_31 = arith.constant 5.000000e-01 : f32
    %74 = vector.broadcast %cst_31 : f32 to vector<256x4xf32>
    %75 = arith.mulf %74, %73 : vector<256x4xf32>
    %76 = arith.subf %65, %66 : vector<256x4xf32>
    %cst_32 = arith.constant 5.000000e-01 : f32
    %77 = vector.broadcast %cst_32 : f32 to vector<256x4xf32>
    %78 = arith.mulf %77, %76 : vector<256x4xf32>
    %79 = arith.addf %69, %75 : vector<256x4xf32>
    %80 = arith.subf %69, %75 : vector<256x4xf32>
    %81 = arith.addf %72, %78 : vector<256x4xf32>
    %82 = arith.subf %72, %78 : vector<256x4xf32>
    %83 = tpu.concatenate %79, %80, %81, %82 in 1 : vector<256x4xf32>, vector<256x4xf32>, vector<256x4xf32>, vector<256x4xf32> -> vector<256x16xf32>
    %c0_33 = arith.constant 0 : index
    %84 = arith.index_cast %48 : i32 to index
    %c0_34 = arith.constant 0 : index
    %85 = vector.load %arg7[%c0_33, %84, %c0_34] : memref<1x256x16xf32, #tpu.memory_space<vmem>>, vector<1x256x16xf32>
    %86 = vector.shape_cast %85 : vector<1x256x16xf32> to vector<256x16xf32>
    %87 = vector.shape_cast %83 : vector<256x16xf32> to vector<1x256x16xf32>
    tpu.vector_store %arg7[%c0_33, %84, %c0_34], %87 {strides = array<i32>} : memref<1x256x16xf32, #tpu.memory_space<vmem>>, vector<1x256x16xf32>,
    %c1_i32 = arith.constant 1 : i32
    return
  }
  func.func @transform_0(%arg0: i32) -> (i32, i32, i32, i32) {
    %c0_i32 = arith.constant 0 : i32
    %c0_i32_0 = arith.constant 0 : i32
    %c0_i32_1 = arith.constant 0 : i32
    %c0_i32_2 = arith.constant 0 : i32
    return %arg0, %c0_i32, %c0_i32_0, %c0_i32_1 : i32, i32, i32, i32
  }
  func.func @transform_1(%arg0: i32) -> (i32, i32) {
    %c0_i32 = arith.constant 0 : i32
    %c0_i32_0 = arith.constant 0 : i32
    %c0_i32_1 = arith.constant 0 : i32
    return %c0_i32, %c0_i32_0 : i32, i32
  }
  func.func @transform_2(%arg0: i32) -> (i32, i32) {
    %c0_i32 = arith.constant 0 : i32
    %c0_i32_0 = arith.constant 0 : i32
    %c0_i32_1 = arith.constant 0 : i32
    return %c0_i32, %c0_i32_0 : i32, i32
  }
  func.func @transform_3(%arg0: i32) -> (i32, i32) {
    %c0_i32 = arith.constant 0 : i32
    %c0_i32_0 = arith.constant 0 : i32
    %c0_i32_1 = arith.constant 0 : i32
    return %c0_i32, %c0_i32_0 : i32, i32
  }
  func.func @transform_4(%arg0: i32) -> (i32, i32) {
    %c0_i32 = arith.constant 0 : i32
    %c0_i32_0 = arith.constant 0 : i32
    %c0_i32_1 = arith.constant 0 : i32
    return %c0_i32, %c0_i32_0 : i32, i32
  }
  func.func @transform_5(%arg0: i32) -> (i32, i32) {
    %c0_i32 = arith.constant 0 : i32
    %c0_i32_0 = arith.constant 0 : i32
    %c0_i32_1 = arith.constant 0 : i32
    return %c0_i32, %c0_i32_0 : i32, i32
  }
  func.func @transform_6(%arg0: i32) -> (i32, i32, i32) {
    %c0_i32 = arith.constant 0 : i32
    %c0_i32_0 = arith.constant 0 : i32
    %c0_i32_1 = arith.constant 0 : i32
    return %arg0, %c0_i32, %c0_i32_0 : i32, i32, i32
  }
}

</mosaic_0001>

<llo_original>
// kernel: tpu_custom_call.1
$region0: #{tpu_custom_call.1}
  #allocation0 [shape = 'u32[]', space=smem, size = 0x4, offset = 0x4, fixed_abs, tag = 'smem constant byte address 0x4 - core index']
  #allocation1 [shape = 'u32[144,128]{1,0:T(1,128)}', space=vmem, size = 0x12000, scoped, tag = 'internal scratch']
  #allocation2 [shape = 'f32[256,16]{1,0:T(8,128)}', space=vmem, size = 0x20000, scoped, tag = 'scratch operand']
  %s0 = inlined_call_operand.vmem [shape: bf16[2,18,18,4], index: 0, kind: input, shape index: {}]
  %s1 = inlined_call_operand.vmem [shape: bf16[36,16], index: 1, kind: input, shape index: {}]
  %s2 = inlined_call_operand.vmem [shape: f32[1,16], index: 2, kind: input, shape index: {}]
  %s3 = inlined_call_operand.vmem [shape: f32[1,16], index: 3, kind: input, shape index: {}]
  %s4 = inlined_call_operand.vmem [shape: f32[1,16], index: 4, kind: input, shape index: {}]
  %s5 = inlined_call_operand.vmem [shape: f32[16,16], index: 5, kind: input, shape index: {}]
  %s6 = inlined_call_operand.vmem [shape: f32[2,256,16], index: 6, kind: output, shape index: {}]
  %s7 = sld [smem:[#allocation0]]
  $region57: #{tpu_custom_call.1} parent=0
    _
  %s9 = ssub.s32 1, %s7
  %s10 = scalar_select 0, %s9, %s7
  loop: start=0, step=1, limit=4
  $region2: #{tpu_custom_call.1} parent=0 // loop_pre_header
    _
  $region3: #{tpu_custom_call.1} parent=0 // loop_header
    %s12 = sphi 0, %s16
    %p13 = scmp.ge.s32.totalorder %s12, 4
    %s22 = sphi 0, %s24
    %s25 = sphi 0, %s22
    %s26 = sphi 0, %s25
    %s42 = sphi 0, %s26
    %s46 = sphi 0, %s46
    %s48 = sphi 0, %s46
    %s49 = sphi 0, %s48
    %s63 = sphi 0, %s49
    %s67 = sphi 0, %s67
    %s69 = sphi 0, %s67
    %s70 = sphi 0, %s69
    %s84 = sphi 0, %s70
    %s88 = sphi 0, %s88
    %s90 = sphi 0, %s88
    %s91 = sphi 0, %s90
    %s105 = sphi 0, %s91
    %s109 = sphi 0, %s109
    %s111 = sphi 0, %s109
    %s112 = sphi 0, %s111
    %s126 = sphi 0, %s112
    %s130 = sphi 0, %s130
    %s132 = sphi 0, %s130
    %s133 = sphi 0, %s132
    %s147 = sphi 0, %s133
    %s153 = sphi 0, %s155
    %s156 = sphi 0, %s153
    %s157 = sphi 0, %s156
    %s173 = sphi 0, %s157
  $region4: #{tpu_custom_call.1} parent=0 // loop_header_branch
    %15 = sbr.rel (%p13) target = $region8
  $region5: #{tpu_custom_call.1} parent=0 // loop_body
    %s17 = ssub.s32 %s12, 1
    %s18 = ssub.s32 %s12, 2
    %s19 = sadd.s32 %s12, 1
    %s20 = ssub.s32 %s12, %s19
    %p21 = scmp.eq.s32.totalorder %s20, 0
    %s23 = sadd.s32 %s22, 1
    %s24 = scalar_select %p21, %s22, %s23
    %p27 = pneg %p21
    %p28 = scmp.eq.s32.totalorder %s12, 1
    %p29 = por %p27, %p28
    %p30 = scmp.ne.s32.totalorder %s22, %s25
    %p31 = scmp.eq.s32.totalorder %s12, 0
    %p32 = por %p30, %p31
    %p33 = scmp.ne.s32.totalorder %s22, %s25
    %p34 = scmp.eq.s32.totalorder %s17, 1
    %p35 = por %p33, %p34
    %p36 = scmp.ne.s32.totalorder %s25, %s26
    %p37 = scmp.eq.s32.totalorder %s17, 0
    %p38 = por %p36, %p37
    %p39 = scmp.ne.s32.totalorder %s25, %s26
    %p40 = scmp.eq.s32.totalorder %s18, 1
    %p41 = por %p39, %p40
    %p43 = scmp.ne.s32.totalorder %s26, %s42
    %p44 = scmp.eq.s32.totalorder %s18, 0
    %p45 = por %p43, %p44
    %s47 = sadd.s32 %s46, 1
    %p50 = scmp.eq.s32.totalorder %s12, 1
    %p51 = scmp.ne.s32.totalorder %s46, %s48
    %p52 = scmp.eq.s32.totalorder %s12, 0
    %p53 = por %p51, %p52
    %p54 = scmp.ne.s32.totalorder %s46, %s48
    %p55 = scmp.eq.s32.totalorder %s17, 1
    %p56 = por %p54, %p55
    %p57 = scmp.ne.s32.totalorder %s48, %s49
    %p58 = scmp.eq.s32.totalorder %s17, 0
    %p59 = por %p57, %p58
    %p60 = scmp.ne.s32.totalorder %s48, %s49
    %p61 = scmp.eq.s32.totalorder %s18, 1
    %p62 = por %p60, %p61
    %p64 = scmp.ne.s32.totalorder %s49, %s63
    %p65 = scmp.eq.s32.totalorder %s18, 0
    %p66 = por %p64, %p65
    %s68 = sadd.s32 %s67, 1
    %p71 = scmp.eq.s32.totalorder %s12, 1
    %p72 = scmp.ne.s32.totalorder %s67, %s69
    %p73 = scmp.eq.s32.totalorder %s12, 0
    %p74 = por %p72, %p73
    %p75 = scmp.ne.s32.totalorder %s67, %s69
    %p76 = scmp.eq.s32.totalorder %s17, 1
    %p77 = por %p75, %p76
    %p78 = scmp.ne.s32.totalorder %s69, %s70
    %p79 = scmp.eq.s32.totalorder %s17, 0
    %p80 = por %p78, %p79
    %p81 = scmp.ne.s32.totalorder %s69, %s70
    %p82 = scmp.eq.s32.totalorder %s18, 1
    %p83 = por %p81, %p82
    %p85 = scmp.ne.s32.totalorder %s70, %s84
    %p86 = scmp.eq.s32.totalorder %s18, 0
    %p87 = por %p85, %p86
    %s89 = sadd.s32 %s88, 1
    %p92 = scmp.eq.s32.totalorder %s12, 1
    %p93 = scmp.ne.s32.totalorder %s88, %s90
    %p94 = scmp.eq.s32.totalorder %s12, 0
    %p95 = por %p93, %p94
    %p96 = scmp.ne.s32.totalorder %s88, %s90
    %p97 = scmp.eq.s32.totalorder %s17, 1
    %p98 = por %p96, %p97
    %p99 = scmp.ne.s32.totalorder %s90, %s91
    %p100 = scmp.eq.s32.totalorder %s17, 0
    %p101 = por %p99, %p100
    %p102 = scmp.ne.s32.totalorder %s90, %s91
    %p103 = scmp.eq.s32.totalorder %s18, 1
    %p104 = por %p102, %p103
    %p106 = scmp.ne.s32.totalorder %s91, %s105
    %p107 = scmp.eq.s32.totalorder %s18, 0
    %p108 = por %p106, %p107
    %s110 = sadd.s32 %s109, 1
    %p113 = scmp.eq.s32.totalorder %s12, 1
    %p114 = scmp.ne.s32.totalorder %s109, %s111
    %p115 = scmp.eq.s32.totalorder %s12, 0
    %p116 = por %p114, %p115
    %p117 = scmp.ne.s32.totalorder %s109, %s111
    %p118 = scmp.eq.s32.totalorder %s17, 1
    %p119 = por %p117, %p118
    %p120 = scmp.ne.s32.totalorder %s111, %s112
    %p121 = scmp.eq.s32.totalorder %s17, 0
    %p122 = por %p120, %p121
    %p123 = scmp.ne.s32.totalorder %s111, %s112
    %p124 = scmp.eq.s32.totalorder %s18, 1
    %p125 = por %p123, %p124
    %p127 = scmp.ne.s32.totalorder %s112, %s126
    %p128 = scmp.eq.s32.totalorder %s18, 0
    %p129 = por %p127, %p128
    %s131 = sadd.s32 %s130, 1
    %p134 = scmp.eq.s32.totalorder %s12, 1
    %p135 = scmp.ne.s32.totalorder %s130, %s132
    %p136 = scmp.eq.s32.totalorder %s12, 0
    %p137 = por %p135, %p136
    %p138 = scmp.ne.s32.totalorder %s130, %s132
    %p139 = scmp.eq.s32.totalorder %s17, 1
    %p140 = por %p138, %p139
    %p141 = scmp.ne.s32.totalorder %s132, %s133
    %p142 = scmp.eq.s32.totalorder %s17, 0
    %p143 = por %p141, %p142
    %p144 = scmp.ne.s32.totalorder %s132, %s133
    %p145 = scmp.eq.s32.totalorder %s18, 1
    %p146 = por %p144, %p145
    %p148 = scmp.ne.s32.totalorder %s133, %s147
    %p149 = scmp.eq.s32.totalorder %s18, 0
    %p150 = por %p148, %p149
    %s151 = ssub.s32 %s12, %s19
    %p152 = scmp.eq.s32.totalorder %s151, 0
    %s154 = sadd.s32 %s153, 1
    %s155 = scalar_select %p152, %s153, %s154
    %p158 = pneg %p152
    %p159 = scmp.eq.s32.totalorder %s12, 1
    %p160 = por %p158, %p159
    %p161 = scmp.ne.s32.totalorder %s153, %s156
    %p162 = scmp.eq.s32.totalorder %s12, 0
    %p163 = por %p161, %p162
    %p164 = scmp.ne.s32.totalorder %s153, %s156
    %p165 = scmp.eq.s32.totalorder %s17, 1
    %p166 = por %p164, %p165
    %p167 = scmp.ne.s32.totalorder %s156, %s157
    %p168 = scmp.eq.s32.totalorder %s17, 0
    %p169 = por %p167, %p168
    %p170 = scmp.ne.s32.totalorder %s156, %s157
    %p171 = scmp.eq.s32.totalorder %s18, 1
    %p172 = por %p170, %p171
    %p174 = scmp.ne.s32.totalorder %s157, %s173
    %p175 = scmp.eq.s32.totalorder %s18, 0
    %p176 = por %p174, %p175
    %p177 = scmp.le.s32.totalorder 1, %s12
    %p178 = scmp.lt.s32.totalorder %s12, 3
    %p179 = pnand %p177, %p178
    %p180 = pneg %p179
    // Predicated region
    $region9: #{tpu_custom_call.1} parent=5 // pred_check
      _
    $region10: #{tpu_custom_call.1} parent=5 // pred_check_branch
      %182 = sbr.rel (%p179) target = $region12
    $region11: #{tpu_custom_call.1} parent=5 // pred_region
      %s183 = ssub.s32 %s12, 1
      // Predicated region
      $region13: #{tpu_custom_call.1} parent=11 // pred_check
        %p184 = pneg %p59
      $region14: #{tpu_custom_call.1} parent=11 // pred_check_branch
        %186 = sbr.rel (%p184) target = $region16
      $region15: #{tpu_custom_call.1} parent=11 // pred_region
        _
      $region16: #{tpu_custom_call.1} parent=11 // pred_fallthru
        _
      // Predicated region
      $region17: #{tpu_custom_call.1} parent=11 // pred_check
        %p187 = pneg %p80
      $region18: #{tpu_custom_call.1} parent=11 // pred_check_branch
        %189 = sbr.rel (%p187) target = $region20
      $region19: #{tpu_custom_call.1} parent=11 // pred_region
        _
      $region20: #{tpu_custom_call.1} parent=11 // pred_fallthru
        _
      // Predicated region
      $region21: #{tpu_custom_call.1} parent=11 // pred_check
        %p190 = pneg %p101
      $region22: #{tpu_custom_call.1} parent=11 // pred_check_branch
        %192 = sbr.rel (%p190) target = $region24
      $region23: #{tpu_custom_call.1} parent=11 // pred_region
        _
      $region24: #{tpu_custom_call.1} parent=11 // pred_fallthru
        _
      // Predicated region
      $region25: #{tpu_custom_call.1} parent=11 // pred_check
        %p193 = pneg %p122
      $region26: #{tpu_custom_call.1} parent=11 // pred_check_branch
        %195 = sbr.rel (%p193) target = $region28
      $region27: #{tpu_custom_call.1} parent=11 // pred_region
        _
      $region28: #{tpu_custom_call.1} parent=11 // pred_fallthru
        _
      // Predicated region
      $region29: #{tpu_custom_call.1} parent=11 // pred_check
        %p196 = pneg %p143
      $region30: #{tpu_custom_call.1} parent=11 // pred_check_branch
        %198 = sbr.rel (%p196) target = $region32
      $region31: #{tpu_custom_call.1} parent=11 // pred_region
        _
      $region32: #{tpu_custom_call.1} parent=11 // pred_fallthru
        _
    $region12: #{tpu_custom_call.1} parent=5 // pred_fallthru
      _
    %p199 = scmp.lt.s32.totalorder %s12, 2
    // Predicated region
    $region33: #{tpu_custom_call.1} parent=5 // pred_check
      %p200 = pneg %p199
    $region34: #{tpu_custom_call.1} parent=5 // pred_check_branch
      %202 = sbr.rel (%p200) target = $region36
    $region35: #{tpu_custom_call.1} parent=5 // pred_region
      // Predicated region
      $region37: #{tpu_custom_call.1} parent=35 // pred_check
        %p203 = pneg %p32
      $region38: #{tpu_custom_call.1} parent=35 // pred_check_branch
        %205 = sbr.rel (%p203) target = $region40
      $region39: #{tpu_custom_call.1} parent=35 // pred_region
        %p206 = scmp.lt.s32.totalorder %s12, 1
        %s207 = scalar_select %p206, %s12, 1
        %s208 = smul.addr %s207, 54
        %s209 = smul.addr %s208, 4
        %s210 = scalar_lea.vmem %s0, %s209
      $region40: #{tpu_custom_call.1} parent=35 // pred_fallthru
        _
    $region36: #{tpu_custom_call.1} parent=5 // pred_fallthru
      _
    %p211 = scmp.le.s32.totalorder 1, %s12
    %p212 = scmp.lt.s32.totalorder %s12, 3
    %p213 = pnand %p211, %p212
    %p214 = pneg %p213
    // Predicated region
    $region41: #{tpu_custom_call.1} parent=5 // pred_check
      _
    $region42: #{tpu_custom_call.1} parent=5 // pred_check_branch
      %216 = sbr.rel (%p213) target = $region44
    $region43: #{tpu_custom_call.1} parent=5 // pred_region
      %s217 = ssub.s32 %s12, 1
      %p218 = scmp.lt.s32.totalorder %s17, 1
      %s219 = scalar_select %p218, %s17, 1
      %s220 = smul.addr %s219, 54
      %s221 = smul.addr %s220, 4
      %s222 = scalar_lea.vmem %s0, %s221
      %p223 = pneg %p38
      %p224 = pneg %p35
      %p225 = pneg %p59
      %p226 = pneg %p56
      %p227 = pneg %p80
      %p228 = pneg %p77
      %p229 = pneg %p101
      %p230 = pneg %p98
      %p231 = pneg %p122
      %p232 = pneg %p119
      %p233 = pneg %p143
      %p234 = pneg %p140
      %p235 = pneg %p169
      %p236 = pneg %p166
      %p237 = scmp.lt.s32.totalorder %s17, 1
      %s238 = scalar_select %p237, %s17, 1
      %s239 = smul.addr %s238, 32
      %s240 = smul.addr %s239, 8
      %s241 = scalar_lea.vmem %s6, %s240
      %p242 = scmp.lt.s32.totalorder %s17, 1
      %s243 = scalar_select %p242, %s17, 1
      %s244 = smul.addr %s243, 54
      %s245 = smul.addr %s244, 4
      %s246 = scalar_lea.vmem %s0, %s245
      %p247 = scmp.lt.s32.totalorder %s17, 1
      %s248 = scalar_select %p247, %s17, 1
      %s249 = smul.addr %s248, 32
      %s250 = smul.addr %s249, 8
      %s251 = scalar_lea.vmem %s6, %s250
      %v253 = vld [vmem:[%s246] sm:$0xf]
      %v254 = vld [vmem:[%s246 + $0x4] sm:$0xf]
      %v255 = vld [vmem:[%s246 + $0x8] sm:$0x1]
      %v256 = vld [vmem:[%s246 + $0xc] sm:$0xf]
      %v257 = vld [vmem:[%s246 + $0x10] sm:$0xf]
      %v258 = vld [vmem:[%s246 + $0x14] sm:$0x1]
      %v259 = vld [vmem:[%s246 + $0x18] sm:$0xf]
      %v260 = vld [vmem:[%s246 + $0x1c] sm:$0xf]
      %v261 = vld [vmem:[%s246 + $0x20] sm:$0x1]
      %v262 = vld [vmem:[%s246 + $0x24] sm:$0xf]
      %v263 = vld [vmem:[%s246 + $0x28] sm:$0xf]
      %v264 = vld [vmem:[%s246 + $0x2c] sm:$0x1]
      %v265 = vld [vmem:[%s246 + $0x30] sm:$0xf]
      %v266 = vld [vmem:[%s246 + $0x34] sm:$0xf]
      %v267 = vld [vmem:[%s246 + $0x38] sm:$0x1]
      %v268 = vld [vmem:[%s246 + $0x3c] sm:$0xf]
      %v269 = vld [vmem:[%s246 + $0x40] sm:$0xf]
      %v270 = vld [vmem:[%s246 + $0x44] sm:$0x1]
      %v271 = vld [vmem:[%s246 + $0x48] sm:$0xf]
      %v272 = vld [vmem:[%s246 + $0x4c] sm:$0xf]
      %v273 = vld [vmem:[%s246 + $0x50] sm:$0x1]
      %v274 = vld [vmem:[%s246 + $0x54] sm:$0xf]
      %v275 = vld [vmem:[%s246 + $0x58] sm:$0xf]
      %v276 = vld [vmem:[%s246 + $0x5c] sm:$0x1]
      %v277 = vld [vmem:[%s246 + $0x60] sm:$0xf]
      %v278 = vld [vmem:[%s246 + $0x64] sm:$0xf]
      %v279 = vld [vmem:[%s246 + $0x68] sm:$0x1]
      %v280 = vld [vmem:[%s246 + $0x6c] sm:$0xf]
      %v281 = vld [vmem:[%s246 + $0x70] sm:$0xf]
      %v282 = vld [vmem:[%s246 + $0x74] sm:$0x1]
      %v283 = vld [vmem:[%s246 + $0x78] sm:$0xf]
      %v284 = vld [vmem:[%s246 + $0x7c] sm:$0xf]
      %v285 = vld [vmem:[%s246 + $0x80] sm:$0x1]
      %v286 = vld [vmem:[%s246 + $0x84] sm:$0xf]
      %v287 = vld [vmem:[%s246 + $0x88] sm:$0xf]
      %v288 = vld [vmem:[%s246 + $0x8c] sm:$0x1]
      %v289 = vld [vmem:[%s246 + $0x90] sm:$0xf]
      %v290 = vld [vmem:[%s246 + $0x94] sm:$0xf]
      %v291 = vld [vmem:[%s246 + $0x98] sm:$0x1]
      %v292 = vld [vmem:[%s246 + $0x9c] sm:$0xf]
      %v293 = vld [vmem:[%s246 + $0xa0] sm:$0xf]
      %v294 = vld [vmem:[%s246 + $0xa4] sm:$0x1]
      %v295 = vld [vmem:[%s246 + $0xa8] sm:$0xf]
      %v296 = vld [vmem:[%s246 + $0xac] sm:$0xf]
      %v297 = vld [vmem:[%s246 + $0xb0] sm:$0x1]
      %v298 = vld [vmem:[%s246 + $0xb4] sm:$0xf]
      %v299 = vld [vmem:[%s246 + $0xb8] sm:$0xf]
      %v300 = vld [vmem:[%s246 + $0xbc] sm:$0x1]
      %v301 = vld [vmem:[%s246 + $0xc0] sm:$0xf]
      %v302 = vld [vmem:[%s246 + $0xc4] sm:$0xf]
      %v303 = vld [vmem:[%s246 + $0xc8] sm:$0x1]
      %v304 = vld [vmem:[%s246 + $0xcc] sm:$0xf]
      %v305 = vld [vmem:[%s246 + $0xd0] sm:$0xf]
      %v306 = vld [vmem:[%s246 + $0xd4] sm:$0x1]
      %v339 = vunpack.c.l.b16 %v253
      %v340 = vunpack.c.l.b16 %v254
      %v341 = vunpack.c.l.b16 %v256
      %v342 = vunpack.c.l.b16 %v257
      %v343 = vunpack.c.l.b16 %v259
      %v344 = vunpack.c.l.b16 %v260
      %v345 = vunpack.c.l.b16 %v262
      %v346 = vunpack.c.l.b16 %v263
      %v347 = vunpack.c.l.b16 %v265
      %v348 = vunpack.c.l.b16 %v266
      %v349 = vunpack.c.l.b16 %v268
      %v350 = vunpack.c.l.b16 %v269
      %v351 = vunpack.c.l.b16 %v271
      %v352 = vunpack.c.l.b16 %v272
      %v353 = vunpack.c.l.b16 %v274
      %v354 = vunpack.c.l.b16 %v275
      %v355 = vunpack.c.l.b16 %v277
      %v356 = vunpack.c.l.b16 %v278
      %v357 = vunpack.c.l.b16 %v280
      %v358 = vunpack.c.l.b16 %v281
      %v359 = vunpack.c.l.b16 %v283
      %v360 = vunpack.c.l.b16 %v284
      %v361 = vunpack.c.l.b16 %v286
      %v362 = vunpack.c.l.b16 %v287
      %v363 = vunpack.c.l.b16 %v289
      %v364 = vunpack.c.l.b16 %v290
      %v365 = vunpack.c.l.b16 %v292
      %v366 = vunpack.c.l.b16 %v293
      %v367 = vunpack.c.l.b16 %v295
      %v368 = vunpack.c.l.b16 %v296
      %v369 = vunpack.c.l.b16 %v298
      %v370 = vunpack.c.l.b16 %v299
      %v371 = vpack.c.b16 %v340, %v339
      %v372 = vpack.c.b16 %v342, %v341
      %v373 = vpack.c.b16 %v344, %v343
      %v374 = vpack.c.b16 %v346, %v345
      %v375 = vpack.c.b16 %v348, %v347
      %v376 = vpack.c.b16 %v350, %v349
      %v377 = vpack.c.b16 %v352, %v351
      %v378 = vpack.c.b16 %v354, %v353
      %v379 = vpack.c.b16 %v356, %v355
      %v380 = vpack.c.b16 %v358, %v357
      %v381 = vpack.c.b16 %v360, %v359
      %v382 = vpack.c.b16 %v362, %v361
      %v383 = vpack.c.b16 %v364, %v363
      %v384 = vpack.c.b16 %v366, %v365
      %v385 = vpack.c.b16 %v368, %v367
      %v386 = vpack.c.b16 %v370, %v369
      %v403 = vunpack.c.l.b16 %v255
      %v404 = vunpack.c.l.b16 %v258
      %v405 = vunpack.c.l.b16 %v261
      %v406 = vunpack.c.l.b16 %v264
      %v407 = vunpack.c.l.b16 %v267
      %v408 = vunpack.c.l.b16 %v270
      %v409 = vunpack.c.l.b16 %v273
      %v410 = vunpack.c.l.b16 %v276
      %v411 = vunpack.c.l.b16 %v279
      %v412 = vunpack.c.l.b16 %v282
      %v413 = vunpack.c.l.b16 %v285
      %v414 = vunpack.c.l.b16 %v288
      %v415 = vunpack.c.l.b16 %v291
      %v416 = vunpack.c.l.b16 %v294
      %v417 = vunpack.c.l.b16 %v297
      %v418 = vunpack.c.l.b16 %v300
      %v419 = vpack.c.b16 %v403, %v403
      %v420 = vpack.c.b16 %v404, %v404
      %v421 = vpack.c.b16 %v405, %v405
      %v422 = vpack.c.b16 %v406, %v406
      %v423 = vpack.c.b16 %v407, %v407
      %v424 = vpack.c.b16 %v408, %v408
      %v425 = vpack.c.b16 %v409, %v409
      %v426 = vpack.c.b16 %v410, %v410
      %v427 = vpack.c.b16 %v411, %v411
      %v428 = vpack.c.b16 %v412, %v412
      %v429 = vpack.c.b16 %v413, %v413
      %v430 = vpack.c.b16 %v414, %v414
      %v431 = vpack.c.b16 %v415, %v415
      %v432 = vpack.c.b16 %v416, %v416
      %v433 = vpack.c.b16 %v417, %v417
      %v434 = vpack.c.b16 %v418, %v418
      %vm435 = vsmask.f32 7424
      %v437 = vshrl.u32 %v371, 16
      %v439 = vshll.u32 %v371, 16
      %v441 = vrot.slane %v439, 1
      %v442 = vor.u32 %v437, %v441
      %v444 = vshll.u32 %v419, 16
      %v446 = vrot.slane %v444, 1
      %v447 = vsel %vm435, %v442, %v446
      %v449 = vshrl.u32 %v372, 16
      %v451 = vshll.u32 %v372, 16
      %v453 = vrot.slane %v451, 1
      %v454 = vor.u32 %v449, %v453
      %v456 = vshll.u32 %v420, 16
      %v458 = vrot.slane %v456, 1
      %v459 = vsel %vm435, %v454, %v458
      %v461 = vshrl.u32 %v373, 16
      %v463 = vshll.u32 %v373, 16
      %v465 = vrot.slane %v463, 1
      %v466 = vor.u32 %v461, %v465
      %v468 = vshll.u32 %v421, 16
      %v470 = vrot.slane %v468, 1
      %v471 = vsel %vm435, %v466, %v470
      %v473 = vshrl.u32 %v374, 16
      %v475 = vshll.u32 %v374, 16
      %v477 = vrot.slane %v475, 1
      %v478 = vor.u32 %v473, %v477
      %v480 = vshll.u32 %v422, 16
      %v482 = vrot.slane %v480, 1
      %v483 = vsel %vm435, %v478, %v482
      %v485 = vshrl.u32 %v375, 16
      %v487 = vshll.u32 %v375, 16
      %v489 = vrot.slane %v487, 1
      %v490 = vor.u32 %v485, %v489
      %v492 = vshll.u32 %v423, 16
      %v494 = vrot.slane %v492, 1
      %v495 = vsel %vm435, %v490, %v494
      %v497 = vshrl.u32 %v376, 16
      %v499 = vshll.u32 %v376, 16
      %v501 = vrot.slane %v499, 1
      %v502 = vor.u32 %v497, %v501
      %v504 = vshll.u32 %v424, 16
      %v506 = vrot.slane %v504, 1
      %v507 = vsel %vm435, %v502, %v506
      %v509 = vshrl.u32 %v377, 16
      %v511 = vshll.u32 %v377, 16
      %v513 = vrot.slane %v511, 1
      %v514 = vor.u32 %v509, %v513
      %v516 = vshll.u32 %v425, 16
      %v518 = vrot.slane %v516, 1
      %v519 = vsel %vm435, %v514, %v518
      %v521 = vshrl.u32 %v378, 16
      %v523 = vshll.u32 %v378, 16
      %v525 = vrot.slane %v523, 1
      %v526 = vor.u32 %v521, %v525
      %v528 = vshll.u32 %v426, 16
      %v530 = vrot.slane %v528, 1
      %v531 = vsel %vm435, %v526, %v530
      %v533 = vshrl.u32 %v379, 16
      %v535 = vshll.u32 %v379, 16
      %v537 = vrot.slane %v535, 1
      %v538 = vor.u32 %v533, %v537
      %v540 = vshll.u32 %v427, 16
      %v542 = vrot.slane %v540, 1
      %v543 = vsel %vm435, %v538, %v542
      %v545 = vshrl.u32 %v380, 16
      %v547 = vshll.u32 %v380, 16
      %v549 = vrot.slane %v547, 1
      %v550 = vor.u32 %v545, %v549
      %v552 = vshll.u32 %v428, 16
      %v554 = vrot.slane %v552, 1
      %v555 = vsel %vm435, %v550, %v554
      %v557 = vshrl.u32 %v381, 16
      %v559 = vshll.u32 %v381, 16
      %v561 = vrot.slane %v559, 1
      %v562 = vor.u32 %v557, %v561
      %v564 = vshll.u32 %v429, 16
      %v566 = vrot.slane %v564, 1
      %v567 = vsel %vm435, %v562, %v566
      %v569 = vshrl.u32 %v382, 16
      %v571 = vshll.u32 %v382, 16
      %v573 = vrot.slane %v571, 1
      %v574 = vor.u32 %v569, %v573
      %v576 = vshll.u32 %v430, 16
      %v578 = vrot.slane %v576, 1
      %v579 = vsel %vm435, %v574, %v578
      %v581 = vshrl.u32 %v383, 16
      %v583 = vshll.u32 %v383, 16
      %v585 = vrot.slane %v583, 1
      %v586 = vor.u32 %v581, %v585
      %v588 = vshll.u32 %v431, 16
      %v590 = vrot.slane %v588, 1
      %v591 = vsel %vm435, %v586, %v590
      %v593 = vshrl.u32 %v384, 16
      %v595 = vshll.u32 %v384, 16
      %v597 = vrot.slane %v595, 1
      %v598 = vor.u32 %v593, %v597
      %v600 = vshll.u32 %v432, 16
      %v602 = vrot.slane %v600, 1
      %v603 = vsel %vm435, %v598, %v602
      %v605 = vshrl.u32 %v385, 16
      %v607 = vshll.u32 %v385, 16
      %v609 = vrot.slane %v607, 1
      %v610 = vor.u32 %v605, %v609
      %v612 = vshll.u32 %v433, 16
      %v614 = vrot.slane %v612, 1
      %v615 = vsel %vm435, %v610, %v614
      %v617 = vshrl.u32 %v386, 16
      %v619 = vshll.u32 %v386, 16
      %v621 = vrot.slane %v619, 1
      %v622 = vor.u32 %v617, %v621
      %v624 = vshll.u32 %v434, 16
      %v626 = vrot.slane %v624, 1
      %v627 = vsel %vm435, %v622, %v626
      %628 = vrot.lane.b32.xlu0 %v447, 4
      %v629 = vpop.permute.xlu0 %628
      %630 = vrot.lane.b32.xlu0 %v459, 4
      %v631 = vpop.permute.xlu0 %630
      %632 = vrot.lane.b32.xlu0 %v471, 4
      %v633 = vpop.permute.xlu0 %632
      %634 = vrot.lane.b32.xlu0 %v483, 4
      %v635 = vpop.permute.xlu0 %634
      %636 = vrot.lane.b32.xlu0 %v495, 4
      %v637 = vpop.permute.xlu0 %636
      %638 = vrot.lane.b32.xlu0 %v507, 4
      %v639 = vpop.permute.xlu0 %638
      %640 = vrot.lane.b32.xlu0 %v519, 4
      %v641 = vpop.permute.xlu0 %640
      %642 = vrot.lane.b32.xlu0 %v531, 4
      %v643 = vpop.permute.xlu0 %642
      %644 = vrot.lane.b32.xlu0 %v543, 4
      %v645 = vpop.permute.xlu0 %644
      %646 = vrot.lane.b32.xlu0 %v555, 4
      %v647 = vpop.permute.xlu0 %646
      %648 = vrot.lane.b32.xlu0 %v567, 4
      %v649 = vpop.permute.xlu0 %648
      %650 = vrot.lane.b32.xlu0 %v579, 4
      %v651 = vpop.permute.xlu0 %650
      %652 = vrot.lane.b32.xlu0 %v591, 4
      %v653 = vpop.permute.xlu0 %652
      %654 = vrot.lane.b32.xlu0 %v603, 4
      %v655 = vpop.permute.xlu0 %654
      %656 = vrot.lane.b32.xlu0 %v615, 4
      %v657 = vpop.permute.xlu0 %656
      %658 = vrot.lane.b32.xlu0 %v627, 4
      %v659 = vpop.permute.xlu0 %658
      %vm660 = vcmask 1046528
      %v661 = vrot.slane %v371, 1
      %v662 = vrot.slane %v419, 1
      %v663 = vsel %vm660, %v661, %v662
      %v664 = vrot.slane %v372, 1
      %v665 = vrot.slane %v420, 1
      %v666 = vsel %vm660, %v664, %v665
      %v667 = vrot.slane %v373, 1
      %v668 = vrot.slane %v421, 1
      %v669 = vsel %vm660, %v667, %v668
      %v670 = vrot.slane %v374, 1
      %v671 = vrot.slane %v422, 1
      %v672 = vsel %vm660, %v670, %v671
      %v673 = vrot.slane %v375, 1
      %v674 = vrot.slane %v423, 1
      %v675 = vsel %vm660, %v673, %v674
      %v676 = vrot.slane %v376, 1
      %v677 = vrot.slane %v424, 1
      %v678 = vsel %vm660, %v676, %v677
      %v679 = vrot.slane %v377, 1
      %v680 = vrot.slane %v425, 1
      %v681 = vsel %vm660, %v679, %v680
      %v682 = vrot.slane %v378, 1
      %v683 = vrot.slane %v426, 1
      %v684 = vsel %vm660, %v682, %v683
      %v685 = vrot.slane %v379, 1
      %v686 = vrot.slane %v427, 1
      %v687 = vsel %vm660, %v685, %v686
      %v688 = vrot.slane %v380, 1
      %v689 = vrot.slane %v428, 1
      %v690 = vsel %vm660, %v688, %v689
      %v691 = vrot.slane %v381, 1
      %v692 = vrot.slane %v429, 1
      %v693 = vsel %vm660, %v691, %v692
      %v694 = vrot.slane %v382, 1
      %v695 = vrot.slane %v430, 1
      %v696 = vsel %vm660, %v694, %v695
      %v697 = vrot.slane %v383, 1
      %v698 = vrot.slane %v431, 1
      %v699 = vsel %vm660, %v697, %v698
      %v700 = vrot.slane %v384, 1
      %v701 = vrot.slane %v432, 1
      %v702 = vsel %vm660, %v700, %v701
      %v703 = vrot.slane %v385, 1
      %v704 = vrot.slane %v433, 1
      %v705 = vsel %vm660, %v703, %v704
      %v706 = vrot.slane %v386, 1
      %v707 = vrot.slane %v434, 1
      %v708 = vsel %vm660, %v706, %v707
      %709 = vrot.lane.b32.xlu0 %v663, 8
      %v710 = vpop.permute.xlu0 %709
      %711 = vrot.lane.b32.xlu0 %v666, 8
      %v712 = vpop.permute.xlu0 %711
      %713 = vrot.lane.b32.xlu0 %v669, 8
      %v714 = vpop.permute.xlu0 %713
      %715 = vrot.lane.b32.xlu0 %v672, 8
      %v716 = vpop.permute.xlu0 %715
      %717 = vrot.lane.b32.xlu0 %v675, 8
      %v718 = vpop.permute.xlu0 %717
      %719 = vrot.lane.b32.xlu0 %v678, 8
      %v720 = vpop.permute.xlu0 %719
      %721 = vrot.lane.b32.xlu0 %v681, 8
      %v722 = vpop.permute.xlu0 %721
      %723 = vrot.lane.b32.xlu0 %v684, 8
      %v724 = vpop.permute.xlu0 %723
      %725 = vrot.lane.b32.xlu0 %v687, 8
      %v726 = vpop.permute.xlu0 %725
      %727 = vrot.lane.b32.xlu0 %v690, 8
      %v728 = vpop.permute.xlu0 %727
      %729 = vrot.lane.b32.xlu0 %v693, 8
      %v730 = vpop.permute.xlu0 %729
      %731 = vrot.lane.b32.xlu0 %v696, 8
      %v732 = vpop.permute.xlu0 %731
      %733 = vrot.lane.b32.xlu0 %v699, 8
      %v734 = vpop.permute.xlu0 %733
      %735 = vrot.lane.b32.xlu0 %v702, 8
      %v736 = vpop.permute.xlu0 %735
      %737 = vrot.lane.b32.xlu0 %v705, 8
      %v738 = vpop.permute.xlu0 %737
      %739 = vrot.lane.b32.xlu0 %v708, 8
      %v740 = vpop.permute.xlu0 %739
      %v743 = vunpack.c.l.b16 %v301
      %v744 = vunpack.c.l.b16 %v302
      %v745 = vpack.c.b16 %v744, %v743
      %746 = vrot.lane.b32.xlu0 %v372, 12
      %v747 = vpop.permute.xlu0 %746
      %748 = vrot.lane.b32.xlu0 %v373, 12
      %v749 = vpop.permute.xlu0 %748
      %750 = vrot.lane.b32.xlu0 %v374, 12
      %v751 = vpop.permute.xlu0 %750
      %752 = vrot.lane.b32.xlu0 %v375, 12
      %v753 = vpop.permute.xlu0 %752
      %754 = vrot.lane.b32.xlu0 %v376, 12
      %v755 = vpop.permute.xlu0 %754
      %756 = vrot.lane.b32.xlu0 %v377, 12
      %v757 = vpop.permute.xlu0 %756
      %758 = vrot.lane.b32.xlu0 %v378, 12
      %v759 = vpop.permute.xlu0 %758
      %760 = vrot.lane.b32.xlu0 %v379, 12
      %v761 = vpop.permute.xlu0 %760
      %762 = vrot.lane.b32.xlu0 %v380, 12
      %v763 = vpop.permute.xlu0 %762
      %764 = vrot.lane.b32.xlu0 %v381, 12
      %v765 = vpop.permute.xlu0 %764
      %766 = vrot.lane.b32.xlu0 %v382, 12
      %v767 = vpop.permute.xlu0 %766
      %768 = vrot.lane.b32.xlu0 %v383, 12
      %v769 = vpop.permute.xlu0 %768
      %770 = vrot.lane.b32.xlu0 %v384, 12
      %v771 = vpop.permute.xlu0 %770
      %772 = vrot.lane.b32.xlu0 %v385, 12
      %v773 = vpop.permute.xlu0 %772
      %774 = vrot.lane.b32.xlu0 %v386, 12
      %v775 = vpop.permute.xlu0 %774
      %776 = vrot.lane.b32.xlu0 %v745, 12
      %v777 = vpop.permute.xlu0 %776
      %v779 = vunpack.c.l.b16 %v303
      %v780 = vpack.c.b16 %v779, %v779
      %v782 = vshrl.u32 %v745, 16
      %v784 = vshll.u32 %v745, 16
      %v786 = vrot.slane %v784, 1
      %v787 = vor.u32 %v782, %v786
      %v789 = vshll.u32 %v780, 16
      %v791 = vrot.slane %v789, 1
      %v792 = vsel %vm435, %v787, %v791
      %793 = vrot.lane.b32.xlu0 %v459, 16
      %v794 = vpop.permute.xlu0 %793
      %795 = vrot.lane.b32.xlu0 %v471, 16
      %v796 = vpop.permute.xlu0 %795
      %797 = vrot.lane.b32.xlu0 %v483, 16
      %v798 = vpop.permute.xlu0 %797
      %799 = vrot.lane.b32.xlu0 %v495, 16
      %v800 = vpop.permute.xlu0 %799
      %801 = vrot.lane.b32.xlu0 %v507, 16
      %v802 = vpop.permute.xlu0 %801
      %803 = vrot.lane.b32.xlu0 %v519, 16
      %v804 = vpop.permute.xlu0 %803
      %805 = vrot.lane.b32.xlu0 %v531, 16
      %v806 = vpop.permute.xlu0 %805
      %807 = vrot.lane.b32.xlu0 %v543, 16
      %v808 = vpop.permute.xlu0 %807
      %809 = vrot.lane.b32.xlu0 %v555, 16
      %v810 = vpop.permute.xlu0 %809
      %811 = vrot.lane.b32.xlu0 %v567, 16
      %v812 = vpop.permute.xlu0 %811
      %813 = vrot.lane.b32.xlu0 %v579, 16
      %v814 = vpop.permute.xlu0 %813
      %815 = vrot.lane.b32.xlu0 %v591, 16
      %v816 = vpop.permute.xlu0 %815
      %817 = vrot.lane.b32.xlu0 %v603, 16
      %v818 = vpop.permute.xlu0 %817
      %819 = vrot.lane.b32.xlu0 %v615, 16
      %v820 = vpop.permute.xlu0 %819
      %821 = vrot.lane.b32.xlu0 %v627, 16
      %v822 = vpop.permute.xlu0 %821
      %823 = vrot.lane.b32.xlu0 %v792, 16
      %v824 = vpop.permute.xlu0 %823
      %v825 = vrot.slane %v745, 1
      %v826 = vrot.slane %v780, 1
      %v827 = vsel %vm660, %v825, %v826
      %828 = vrot.lane.b32.xlu0 %v666, 20
      %v829 = vpop.permute.xlu0 %828
      %830 = vrot.lane.b32.xlu0 %v669, 20
      %v831 = vpop.permute.xlu0 %830
      %832 = vrot.lane.b32.xlu0 %v672, 20
      %v833 = vpop.permute.xlu0 %832
      %834 = vrot.lane.b32.xlu0 %v675, 20
      %v835 = vpop.permute.xlu0 %834
      %836 = vrot.lane.b32.xlu0 %v678, 20
      %v837 = vpop.permute.xlu0 %836
      %838 = vrot.lane.b32.xlu0 %v681, 20
      %v839 = vpop.permute.xlu0 %838
      %840 = vrot.lane.b32.xlu0 %v684, 20
      %v841 = vpop.permute.xlu0 %840
      %842 = vrot.lane.b32.xlu0 %v687, 20
      %v843 = vpop.permute.xlu0 %842
      %844 = vrot.lane.b32.xlu0 %v690, 20
      %v845 = vpop.permute.xlu0 %844
      %846 = vrot.lane.b32.xlu0 %v693, 20
      %v847 = vpop.permute.xlu0 %846
      %848 = vrot.lane.b32.xlu0 %v696, 20
      %v849 = vpop.permute.xlu0 %848
      %850 = vrot.lane.b32.xlu0 %v699, 20
      %v851 = vpop.permute.xlu0 %850
      %852 = vrot.lane.b32.xlu0 %v702, 20
      %v853 = vpop.permute.xlu0 %852
      %854 = vrot.lane.b32.xlu0 %v705, 20
      %v855 = vpop.permute.xlu0 %854
      %856 = vrot.lane.b32.xlu0 %v708, 20
      %v857 = vpop.permute.xlu0 %856
      %858 = vrot.lane.b32.xlu0 %v827, 20
      %v859 = vpop.permute.xlu0 %858
      %v862 = vunpack.c.l.b16 %v304
      %v863 = vunpack.c.l.b16 %v305
      %v864 = vpack.c.b16 %v863, %v862
      %865 = vrot.lane.b32.xlu0 %v373, 24
      %v866 = vpop.permute.xlu0 %865
      %867 = vrot.lane.b32.xlu0 %v374, 24
      %v868 = vpop.permute.xlu0 %867
      %869 = vrot.lane.b32.xlu0 %v375, 24
      %v870 = vpop.permute.xlu0 %869
      %871 = vrot.lane.b32.xlu0 %v376, 24
      %v872 = vpop.permute.xlu0 %871
      %873 = vrot.lane.b32.xlu0 %v377, 24
      %v874 = vpop.permute.xlu0 %873
      %875 = vrot.lane.b32.xlu0 %v378, 24
      %v876 = vpop.permute.xlu0 %875
      %877 = vrot.lane.b32.xlu0 %v379, 24
      %v878 = vpop.permute.xlu0 %877
      %879 = vrot.lane.b32.xlu0 %v380, 24
      %v880 = vpop.permute.xlu0 %879
      %881 = vrot.lane.b32.xlu0 %v381, 24
      %v882 = vpop.permute.xlu0 %881
      %883 = vrot.lane.b32.xlu0 %v382, 24
      %v884 = vpop.permute.xlu0 %883
      %885 = vrot.lane.b32.xlu0 %v383, 24
      %v886 = vpop.permute.xlu0 %885
      %887 = vrot.lane.b32.xlu0 %v384, 24
      %v888 = vpop.permute.xlu0 %887
      %889 = vrot.lane.b32.xlu0 %v385, 24
      %v890 = vpop.permute.xlu0 %889
      %891 = vrot.lane.b32.xlu0 %v386, 24
      %v892 = vpop.permute.xlu0 %891
      %893 = vrot.lane.b32.xlu0 %v745, 24
      %v894 = vpop.permute.xlu0 %893
      %895 = vrot.lane.b32.xlu0 %v864, 24
      %v896 = vpop.permute.xlu0 %895
      %v898 = vunpack.c.l.b16 %v306
      %v899 = vpack.c.b16 %v898, %v898
      %v901 = vshrl.u32 %v864, 16
      %v903 = vshll.u32 %v864, 16
      %v905 = vrot.slane %v903, 1
      %v906 = vor.u32 %v901, %v905
      %v908 = vshll.u32 %v899, 16
      %v910 = vrot.slane %v908, 1
      %v911 = vsel %vm435, %v906, %v910
      %912 = vrot.lane.b32.xlu0 %v471, 28
      %v913 = vpop.permute.xlu0 %912
      %914 = vrot.lane.b32.xlu0 %v483, 28
      %v915 = vpop.permute.xlu0 %914
      %916 = vrot.lane.b32.xlu0 %v495, 28
      %v917 = vpop.permute.xlu0 %916
      %918 = vrot.lane.b32.xlu0 %v507, 28
      %v919 = vpop.permute.xlu0 %918
      %920 = vrot.lane.b32.xlu0 %v519, 28
      %v921 = vpop.permute.xlu0 %920
      %922 = vrot.lane.b32.xlu0 %v531, 28
      %v923 = vpop.permute.xlu0 %922
      %924 = vrot.lane.b32.xlu0 %v543, 28
      %v925 = vpop.permute.xlu0 %924
      %926 = vrot.lane.b32.xlu0 %v555, 28
      %v927 = vpop.permute.xlu0 %926
      %928 = vrot.lane.b32.xlu0 %v567, 28
      %v929 = vpop.permute.xlu0 %928
      %930 = vrot.lane.b32.xlu0 %v579, 28
      %v931 = vpop.permute.xlu0 %930
      %932 = vrot.lane.b32.xlu0 %v591, 28
      %v933 = vpop.permute.xlu0 %932
      %934 = vrot.lane.b32.xlu0 %v603, 28
      %v935 = vpop.permute.xlu0 %934
      %936 = vrot.lane.b32.xlu0 %v615, 28
      %v937 = vpop.permute.xlu0 %936
      %938 = vrot.lane.b32.xlu0 %v627, 28
      %v939 = vpop.permute.xlu0 %938
      %940 = vrot.lane.b32.xlu0 %v792, 28
      %v941 = vpop.permute.xlu0 %940
      %942 = vrot.lane.b32.xlu0 %v911, 28
      %v943 = vpop.permute.xlu0 %942
      %v944 = vrot.slane %v864, 1
      %v945 = vrot.slane %v899, 1
      %v946 = vsel %vm660, %v944, %v945
      %947 = vrot.lane.b32.xlu0 %v669, 32
      %v948 = vpop.permute.xlu0 %947
      %949 = vrot.lane.b32.xlu0 %v672, 32
      %v950 = vpop.permute.xlu0 %949
      %951 = vrot.lane.b32.xlu0 %v675, 32
      %v952 = vpop.permute.xlu0 %951
      %953 = vrot.lane.b32.xlu0 %v678, 32
      %v954 = vpop.permute.xlu0 %953
      %955 = vrot.lane.b32.xlu0 %v681, 32
      %v956 = vpop.permute.xlu0 %955
      %957 = vrot.lane.b32.xlu0 %v684, 32
      %v958 = vpop.permute.xlu0 %957
      %959 = vrot.lane.b32.xlu0 %v687, 32
      %v960 = vpop.permute.xlu0 %959
      %961 = vrot.lane.b32.xlu0 %v690, 32
      %v962 = vpop.permute.xlu0 %961
      %963 = vrot.lane.b32.xlu0 %v693, 32
      %v964 = vpop.permute.xlu0 %963
      %965 = vrot.lane.b32.xlu0 %v696, 32
      %v966 = vpop.permute.xlu0 %965
      %967 = vrot.lane.b32.xlu0 %v699, 32
      %v968 = vpop.permute.xlu0 %967
      %969 = vrot.lane.b32.xlu0 %v702, 32
      %v970 = vpop.permute.xlu0 %969
      %971 = vrot.lane.b32.xlu0 %v705, 32
      %v972 = vpop.permute.xlu0 %971
      %973 = vrot.lane.b32.xlu0 %v708, 32
      %v974 = vpop.permute.xlu0 %973
      %975 = vrot.lane.b32.xlu0 %v827, 32
      %v976 = vpop.permute.xlu0 %975
      %977 = vrot.lane.b32.xlu0 %v946, 32
      %v978 = vpop.permute.xlu0 %977
      %vm979 = vcmask 31744
      %v981 = vsel %vm979, %v371, %v629
      %v983 = vsel %vm979, %v372, %v631
      %v985 = vsel %vm979, %v373, %v633
      %v987 = vsel %vm979, %v374, %v635
      %v989 = vsel %vm979, %v375, %v637
      %v991 = vsel %vm979, %v376, %v639
      %v993 = vsel %vm979, %v377, %v641
      %v995 = vsel %vm979, %v378, %v643
      %v997 = vsel %vm979, %v379, %v645
      %v999 = vsel %vm979, %v380, %v647
      %v1001 = vsel %vm979, %v381, %v649
      %v1003 = vsel %vm979, %v382, %v651
      %v1005 = vsel %vm979, %v383, %v653
      %v1007 = vsel %vm979, %v384, %v655
      %v1009 = vsel %vm979, %v385, %v657
      %v1011 = vsel %vm979, %v386, %v659
      %vm1012 = vcmask 64512
      %v1014 = vsel %vm1012, %v981, %v710
      %v1016 = vsel %vm1012, %v983, %v712
      %v1018 = vsel %vm1012, %v985, %v714
      %v1020 = vsel %vm1012, %v987, %v716
      %v1022 = vsel %vm1012, %v989, %v718
      %v1024 = vsel %vm1012, %v991, %v720
      %v1026 = vsel %vm1012, %v993, %v722
      %v1028 = vsel %vm1012, %v995, %v724
      %v1030 = vsel %vm1012, %v997, %v726
      %v1032 = vsel %vm1012, %v999, %v728
      %v1034 = vsel %vm1012, %v1001, %v730
      %v1036 = vsel %vm1012, %v1003, %v732
      %v1038 = vsel %vm1012, %v1005, %v734
      %v1040 = vsel %vm1012, %v1007, %v736
      %v1042 = vsel %vm1012, %v1009, %v738
      %v1044 = vsel %vm1012, %v1011, %v740
      %vm1045 = vcmask 97280
      %v1047 = vsel %vm1045, %v1014, %v747
      %v1049 = vsel %vm1045, %v1016, %v749
      %v1051 = vsel %vm1045, %v1018, %v751
      %v1053 = vsel %vm1045, %v1020, %v753
      %v1055 = vsel %vm1045, %v1022, %v755
      %v1057 = vsel %vm1045, %v1024, %v757
      %v1059 = vsel %vm1045, %v1026, %v759
      %v1061 = vsel %vm1045, %v1028, %v761
      %v1063 = vsel %vm1045, %v1030, %v763
      %v1065 = vsel %vm1045, %v1032, %v765
      %v1067 = vsel %vm1045, %v1034, %v767
      %v1069 = vsel %vm1045, %v1036, %v769
      %v1071 = vsel %vm1045, %v1038, %v771
      %v1073 = vsel %vm1045, %v1040, %v773
      %v1075 = vsel %vm1045, %v1042, %v775
      %v1077 = vsel %vm1045, %v1044, %v777
      %vm1078 = vcmask 130048
      %v1080 = vsel %vm1078, %v1047, %v794
      %v1082 = vsel %vm1078, %v1049, %v796
      %v1084 = vsel %vm1078, %v1051, %v798
      %v1086 = vsel %vm1078, %v1053, %v800
      %v1088 = vsel %vm1078, %v1055, %v802
      %v1090 = vsel %vm1078, %v1057, %v804
      %v1092 = vsel %vm1078, %v1059, %v806
      %v1094 = vsel %vm1078, %v1061, %v808
      %v1096 = vsel %vm1078, %v1063, %v810
      %v1098 = vsel %vm1078, %v1065, %v812
      %v1100 = vsel %vm1078, %v1067, %v814
      %v1102 = vsel %vm1078, %v1069, %v816
      %v1104 = vsel %vm1078, %v1071, %v818
      %v1106 = vsel %vm1078, %v1073, %v820
      %v1108 = vsel %vm1078, %v1075, %v822
      %v1110 = vsel %vm1078, %v1077, %v824
      %vm1111 = vcmask 162816
      %v1113 = vsel %vm1111, %v1080, %v829
      %v1115 = vsel %vm1111, %v1082, %v831
      %v1117 = vsel %vm1111, %v1084, %v833
      %v1119 = vsel %vm1111, %v1086, %v835
      %v1121 = vsel %vm1111, %v1088, %v837
      %v1123 = vsel %vm1111, %v1090, %v839
      %v1125 = vsel %vm1111, %v1092, %v841
      %v1127 = vsel %vm1111, %v1094, %v843
      %v1129 = vsel %vm1111, %v1096, %v845
      %v1131 = vsel %vm1111, %v1098, %v847
      %v1133 = vsel %vm1111, %v1100, %v849
      %v1135 = vsel %vm1111, %v1102, %v851
      %v1137 = vsel %vm1111, %v1104, %v853
      %v1139 = vsel %vm1111, %v1106, %v855
      %v1141 = vsel %vm1111, %v1108, %v857
      %v1143 = vsel %vm1111, %v1110, %v859
      %vm1144 = vcmask 195584
      %v1146 = vsel %vm1144, %v1113, %v866
      %v1148 = vsel %vm1144, %v1115, %v868
      %v1150 = vsel %vm1144, %v1117, %v870
      %v1152 = vsel %vm1144, %v1119, %v872
      %v1154 = vsel %vm1144, %v1121, %v874
      %v1156 = vsel %vm1144, %v1123, %v876
      %v1158 = vsel %vm1144, %v1125, %v878
      %v1160 = vsel %vm1144, %v1127, %v880
      %v1162 = vsel %vm1144, %v1129, %v882
      %v1164 = vsel %vm1144, %v1131, %v884
      %v1166 = vsel %vm1144, %v1133, %v886
      %v1168 = vsel %vm1144, %v1135, %v888
      %v1170 = vsel %vm1144, %v1137, %v890
      %v1172 = vsel %vm1144, %v1139, %v892
      %v1174 = vsel %vm1144, %v1141, %v894
      %v1176 = vsel %vm1144, %v1143, %v896
      %vm1177 = vcmask 228352
      %v1179 = vsel %vm1177, %v1146, %v913
      %v1181 = vsel %vm1177, %v1148, %v915
      %v1183 = vsel %vm1177, %v1150, %v917
      %v1185 = vsel %vm1177, %v1152, %v919
      %v1187 = vsel %vm1177, %v1154, %v921
      %v1189 = vsel %vm1177, %v1156, %v923
      %v1191 = vsel %vm1177, %v1158, %v925
      %v1193 = vsel %vm1177, %v1160, %v927
      %v1195 = vsel %vm1177, %v1162, %v929
      %v1197 = vsel %vm1177, %v1164, %v931
      %v1199 = vsel %vm1177, %v1166, %v933
      %v1201 = vsel %vm1177, %v1168, %v935
      %v1203 = vsel %vm1177, %v1170, %v937
      %v1205 = vsel %vm1177, %v1172, %v939
      %v1207 = vsel %vm1177, %v1174, %v941
      %v1209 = vsel %vm1177, %v1176, %v943
      %vm1210 = vcmask 261120
      %v1212 = vsel %vm1210, %v1179, %v948
      %v1214 = vsel %vm1210, %v1181, %v950
      %v1216 = vsel %vm1210, %v1183, %v952
      %v1218 = vsel %vm1210, %v1185, %v954
      %v1220 = vsel %vm1210, %v1187, %v956
      %v1222 = vsel %vm1210, %v1189, %v958
      %v1224 = vsel %vm1210, %v1191, %v960
      %v1226 = vsel %vm1210, %v1193, %v962
      %v1228 = vsel %vm1210, %v1195, %v964
      %v1230 = vsel %vm1210, %v1197, %v966
      %v1232 = vsel %vm1210, %v1199, %v968
      %v1234 = vsel %vm1210, %v1201, %v970
      %v1236 = vsel %vm1210, %v1203, %v972
      %v1238 = vsel %vm1210, %v1205, %v974
      %v1240 = vsel %vm1210, %v1207, %v976
      %v1242 = vsel %vm1210, %v1209, %v978
      %v1243 = vld [vmem:[%s1] sm:$0xf]
      %v1244 = vld [vmem:[%s1 + $0x4] sm:$0xf]
      %v1245 = vld [vmem:[%s1 + $0x8] sm:$0xf]
      %v1246 = vld [vmem:[%s1 + $0xc] sm:$0xf]
      %v1247 = vld [vmem:[%s1 + $0x10] sm:$0x3]
      %v1248 = vld [vmem:[%s2] sm:$0x1]
      %v1250 = vlaneseq
      %v1251 = vshrl.u32 %v1250, 7
      %v1252 = vsub.s32 0, %v1251
      %v1253 = vrot.slane %v1248, %v1252
      %v1260 = vunpack.c.l.b16 %v1243
      %v1261 = vunpack.c.l.b16 %v1244
      %v1262 = vunpack.c.l.b16 %v1245
      %v1263 = vunpack.c.l.b16 %v1246
      %v1264 = vunpack.c.l.b16 %v1247
      %v1265 = vpack.c.b16 %v1261, %v1260
      %v1266 = vpack.c.b16 %v1263, %v1262
      %v1267 = vpack.c.b16 %v1264, %v1264
      %vm1270 = vcmask 293888
      %v1271 = vsel %vm1270, %v1212, 0
      %v1273 = vsel %vm1270, %v1214, 0
      %v1275 = vsel %vm1270, %v1216, 0
      %v1277 = vsel %vm1270, %v1218, 0
      %v1279 = vsel %vm1270, %v1220, 0
      %v1281 = vsel %vm1270, %v1222, 0
      %v1283 = vsel %vm1270, %v1224, 0
      %v1285 = vsel %vm1270, %v1226, 0
      %v1287 = vsel %vm1270, %v1228, 0
      %v1289 = vsel %vm1270, %v1230, 0
      %v1291 = vsel %vm1270, %v1232, 0
      %v1293 = vsel %vm1270, %v1234, 0
      %v1295 = vsel %vm1270, %v1236, 0
      %v1297 = vsel %vm1270, %v1238, 0
      %v1299 = vsel %vm1270, %v1240, 0
      %v1301 = vsel %vm1270, %v1242, 0
      %vm1303 = vcmask 1041408
      %v1305 = vsel %vm1303, %v1267, 0
      %1307 = vmatprep.subr.bf16.mxu0 0
      %1308 = vmatpush1.bf16.msra.mxu0 %v1265
      %1309 = vmatprep.subr.bf16.mxu0 0
      %1310 = vmatpush1.bf16.msra.mxu0 %v1266
      %1311 = vmatprep.subr.bf16.mxu0 0
      %1312 = vmatpush1.bf16.msra.mxu0 %v1305
      %1313 = vmatprep.subr.bf16.mxu0 0
      %1314 = vmatpush1.bf16.msra.mxu0 0
      %1315 = vmatprep.subr.bf16.mxu0 0
      %1316 = vmatpush1.bf16.msra.mxu0 0
      %1317 = vmatprep.subr.bf16.mxu0 0
      %1318 = vmatpush1.bf16.msra.mxu0 0
      %1319 = vmatprep.subr.bf16.mxu0 0
      %1320 = vmatpush1.bf16.msra.mxu0 0
      %1321 = vmatprep.subr.bf16.mxu0 0
      %1322 = vmatpush1.bf16.msra.mxu0 0
      %1323 = vmatprep.subr.bf16.mxu0 0
      %1324 = vmatpush1.bf16.msra.mxu0 0
      %1325 = vmatprep.subr.bf16.mxu0 0
      %1326 = vmatpush1.bf16.msra.mxu0 0
      %1327 = vmatprep.subr.bf16.mxu0 0
      %1328 = vmatpush1.bf16.msra.mxu0 0
      %1329 = vmatprep.subr.bf16.mxu0 0
      %1330 = vmatpush1.bf16.msra.mxu0 0
      %1331 = vmatprep.subr.bf16.mxu0 0
      %1332 = vmatpush1.bf16.msra.mxu0 0
      %1333 = vmatprep.subr.bf16.mxu0 0
      %1334 = vmatpush1.bf16.msra.mxu0 0
      %1335 = vmatprep.subr.bf16.mxu0 0
      %1336 = vmatpush1.bf16.msra.mxu0 0
      %1337 = vmatprep.subr.bf16.mxu0 0
      %1338 = vmatpush1.bf16.msra.mxu0 0
      %1339 = vmatprep.mubr.bf16.mxu0 0
      %1340 = vmatmul.mubr.bf16.gmra.mrb[0].mxu0 %v1271
      %v1341 = vpop.f32.mrb[0].mxu0
      %v1342 = vadd.f32 %v1253, %v1341
      %v1343 = vpop.f32.mrb[0].mxu0
      %v1344 = vpop.f32.mrb[0].mxu0
      %v1345 = vadd.f32 %v1253, %v1344
      %v1346 = vpop.f32.mrb[0].mxu0
      %1347 = vmatprep.mubr.bf16.mxu0 0
      %1348 = vmatmul.mubr.bf16.gmra.mrb[0].mxu0 %v1273
      %v1349 = vpop.f32.mrb[0].mxu0
      %v1350 = vadd.f32 %v1253, %v1349
      %v1351 = vpop.f32.mrb[0].mxu0
      %v1352 = vpop.f32.mrb[0].mxu0
      %v1353 = vadd.f32 %v1253, %v1352
      %v1354 = vpop.f32.mrb[0].mxu0
      %1355 = vmatprep.mubr.bf16.mxu0 0
      %1356 = vmatmul.mubr.bf16.gmra.mrb[0].mxu0 %v1275
      %v1357 = vpop.f32.mrb[0].mxu0
      %v1358 = vadd.f32 %v1253, %v1357
      %v1359 = vpop.f32.mrb[0].mxu0
      %v1360 = vpop.f32.mrb[0].mxu0
      %v1361 = vadd.f32 %v1253, %v1360
      %v1362 = vpop.f32.mrb[0].mxu0
      %1363 = vmatprep.mubr.bf16.mxu0 0
      %1364 = vmatmul.mubr.bf16.gmra.mrb[0].mxu0 %v1277
      %v1365 = vpop.f32.mrb[0].mxu0
      %v1366 = vadd.f32 %v1253, %v1365
      %v1367 = vpop.f32.mrb[0].mxu0
      %v1368 = vpop.f32.mrb[0].mxu0
      %v1369 = vadd.f32 %v1253, %v1368
      %v1370 = vpop.f32.mrb[0].mxu0
      %1371 = vmatprep.mubr.bf16.mxu0 0
      %1372 = vmatmul.mubr.bf16.gmra.mrb[0].mxu0 %v1279
      %v1373 = vpop.f32.mrb[0].mxu0
      %v1374 = vadd.f32 %v1253, %v1373
      %v1375 = vpop.f32.mrb[0].mxu0
      %v1376 = vpop.f32.mrb[0].mxu0
      %v1377 = vadd.f32 %v1253, %v1376
      %v1378 = vpop.f32.mrb[0].mxu0
      %1379 = vmatprep.mubr.bf16.mxu0 0
      %1380 = vmatmul.mubr.bf16.gmra.mrb[0].mxu0 %v1281
      %v1381 = vpop.f32.mrb[0].mxu0
      %v1382 = vadd.f32 %v1253, %v1381
      %v1383 = vpop.f32.mrb[0].mxu0
      %v1384 = vpop.f32.mrb[0].mxu0
      %v1385 = vadd.f32 %v1253, %v1384
      %v1386 = vpop.f32.mrb[0].mxu0
      %1387 = vmatprep.mubr.bf16.mxu0 0
      %1388 = vmatmul.mubr.bf16.gmra.mrb[0].mxu0 %v1283
      %v1389 = vpop.f32.mrb[0].mxu0
      %v1390 = vadd.f32 %v1253, %v1389
      %v1391 = vpop.f32.mrb[0].mxu0
      %v1392 = vpop.f32.mrb[0].mxu0
      %v1393 = vadd.f32 %v1253, %v1392
      %v1394 = vpop.f32.mrb[0].mxu0
      %1395 = vmatprep.mubr.bf16.mxu0 0
      %1396 = vmatmul.mubr.bf16.gmra.mrb[0].mxu0 %v1285
      %v1397 = vpop.f32.mrb[0].mxu0
      %v1398 = vadd.f32 %v1253, %v1397
      %v1399 = vpop.f32.mrb[0].mxu0
      %v1400 = vpop.f32.mrb[0].mxu0
      %v1401 = vadd.f32 %v1253, %v1400
      %v1402 = vpop.f32.mrb[0].mxu0
      %1403 = vmatprep.mubr.bf16.mxu0 0
      %1404 = vmatmul.mubr.bf16.gmra.mrb[0].mxu0 %v1287
      %v1405 = vpop.f32.mrb[0].mxu0
      %v1406 = vadd.f32 %v1253, %v1405
      %v1407 = vpop.f32.mrb[0].mxu0
      %v1408 = vpop.f32.mrb[0].mxu0
      %v1409 = vadd.f32 %v1253, %v1408
      %v1410 = vpop.f32.mrb[0].mxu0
      %1411 = vmatprep.mubr.bf16.mxu0 0
      %1412 = vmatmul.mubr.bf16.gmra.mrb[0].mxu0 %v1289
      %v1413 = vpop.f32.mrb[0].mxu0
      %v1414 = vadd.f32 %v1253, %v1413
      %v1415 = vpop.f32.mrb[0].mxu0
      %v1416 = vpop.f32.mrb[0].mxu0
      %v1417 = vadd.f32 %v1253, %v1416
      %v1418 = vpop.f32.mrb[0].mxu0
      %1419 = vmatprep.mubr.bf16.mxu0 0
      %1420 = vmatmul.mubr.bf16.gmra.mrb[0].mxu0 %v1291
      %v1421 = vpop.f32.mrb[0].mxu0
      %v1422 = vadd.f32 %v1253, %v1421
      %v1423 = vpop.f32.mrb[0].mxu0
      %v1424 = vpop.f32.mrb[0].mxu0
      %v1425 = vadd.f32 %v1253, %v1424
      %v1426 = vpop.f32.mrb[0].mxu0
      %1427 = vmatprep.mubr.bf16.mxu0 0
      %1428 = vmatmul.mubr.bf16.gmra.mrb[0].mxu0 %v1293
      %v1429 = vpop.f32.mrb[0].mxu0
      %v1430 = vadd.f32 %v1253, %v1429
      %v1431 = vpop.f32.mrb[0].mxu0
      %v1432 = vpop.f32.mrb[0].mxu0
      %v1433 = vadd.f32 %v1253, %v1432
      %v1434 = vpop.f32.mrb[0].mxu0
      %1435 = vmatprep.mubr.bf16.mxu0 0
      %1436 = vmatmul.mubr.bf16.gmra.mrb[0].mxu0 %v1295
      %v1437 = vpop.f32.mrb[0].mxu0
      %v1438 = vadd.f32 %v1253, %v1437
      %v1439 = vpop.f32.mrb[0].mxu0
      %v1440 = vpop.f32.mrb[0].mxu0
      %v1441 = vadd.f32 %v1253, %v1440
      %v1442 = vpop.f32.mrb[0].mxu0
      %1443 = vmatprep.mubr.bf16.mxu0 0
      %1444 = vmatmul.mubr.bf16.gmra.mrb[0].mxu0 %v1297
      %v1445 = vpop.f32.mrb[0].mxu0
      %v1446 = vadd.f32 %v1253, %v1445
      %v1447 = vpop.f32.mrb[0].mxu0
      %v1448 = vpop.f32.mrb[0].mxu0
      %v1449 = vadd.f32 %v1253, %v1448
      %v1450 = vpop.f32.mrb[0].mxu0
      %1451 = vmatprep.mubr.bf16.mxu0 0
      %1452 = vmatmul.mubr.bf16.gmra.mrb[0].mxu0 %v1299
      %v1453 = vpop.f32.mrb[0].mxu0
      %v1454 = vadd.f32 %v1253, %v1453
      %v1455 = vpop.f32.mrb[0].mxu0
      %v1456 = vpop.f32.mrb[0].mxu0
      %v1457 = vadd.f32 %v1253, %v1456
      %v1458 = vpop.f32.mrb[0].mxu0
      %1459 = vmatprep.mubr.bf16.mxu0 0
      %1460 = vmatmul.mubr.bf16.gmra.mrb[0].mxu0 %v1301
      %v1461 = vpop.f32.mrb[0].mxu0
      %v1462 = vadd.f32 %v1253, %v1461
      %v1463 = vpop.f32.mrb[0].mxu0
      %v1464 = vpop.f32.mrb[0].mxu0
      %v1465 = vadd.f32 %v1253, %v1464
      %v1466 = vpop.f32.mrb[0].mxu0
      %1467 = vdwg.mxu0
      %v1468 = vsel %vm1078, %v1342, 0.0
      %v1469 = vsel %vm1078, %v1345, 0.0
      %v1470 = vadd.f32 %v1468, %v1469
      %v1471 = vsel %vm1078, %v1350, 0.0
      %v1472 = vadd.f32 %v1470, %v1471
      %v1473 = vsel %vm1078, %v1353, 0.0
      %v1474 = vadd.f32 %v1472, %v1473
      %v1475 = vsel %vm1078, %v1358, 0.0
      %v1476 = vadd.f32 %v1474, %v1475
      %v1477 = vsel %vm1078, %v1361, 0.0
      %v1478 = vadd.f32 %v1476, %v1477
      %v1479 = vsel %vm1078, %v1366, 0.0
      %v1480 = vadd.f32 %v1478, %v1479
      %v1481 = vsel %vm1078, %v1369, 0.0
      %v1482 = vadd.f32 %v1480, %v1481
      %v1483 = vsel %vm1078, %v1374, 0.0
      %v1484 = vadd.f32 %v1482, %v1483
      %v1485 = vsel %vm1078, %v1377, 0.0
      %v1486 = vadd.f32 %v1484, %v1485
      %v1487 = vsel %vm1078, %v1382, 0.0
      %v1488 = vadd.f32 %v1486, %v1487
      %v1489 = vsel %vm1078, %v1385, 0.0
      %v1490 = vadd.f32 %v1488, %v1489
      %v1491 = vsel %vm1078, %v1390, 0.0
      %v1492 = vadd.f32 %v1490, %v1491
      %v1493 = vsel %vm1078, %v1393, 0.0
      %v1494 = vadd.f32 %v1492, %v1493
      %v1495 = vsel %vm1078, %v1398, 0.0
      %v1496 = vadd.f32 %v1494, %v1495
      %v1497 = vsel %vm1078, %v1401, 0.0
      %v1498 = vadd.f32 %v1496, %v1497
      %v1499 = vsel %vm1078, %v1406, 0.0
      %v1500 = vadd.f32 %v1498, %v1499
      %v1501 = vsel %vm1078, %v1409, 0.0
      %v1502 = vadd.f32 %v1500, %v1501
      %v1503 = vsel %vm1078, %v1414, 0.0
      %v1504 = vadd.f32 %v1502, %v1503
      %v1505 = vsel %vm1078, %v1417, 0.0
      %v1506 = vadd.f32 %v1504, %v1505
      %v1507 = vsel %vm1078, %v1422, 0.0
      %v1508 = vadd.f32 %v1506, %v1507
      %v1509 = vsel %vm1078, %v1425, 0.0
      %v1510 = vadd.f32 %v1508, %v1509
      %v1511 = vsel %vm1078, %v1430, 0.0
      %v1512 = vadd.f32 %v1510, %v1511
      %v1513 = vsel %vm1078, %v1433, 0.0
      %v1514 = vadd.f32 %v1512, %v1513
      %v1515 = vsel %vm1078, %v1438, 0.0
      %v1516 = vadd.f32 %v1514, %v1515
      %v1517 = vsel %vm1078, %v1441, 0.0
      %v1518 = vadd.f32 %v1516, %v1517
      %v1519 = vsel %vm1078, %v1446, 0.0
      %v1520 = vadd.f32 %v1518, %v1519
      %v1521 = vsel %vm1078, %v1449, 0.0
      %v1522 = vadd.f32 %v1520, %v1521
      %v1523 = vsel %vm1078, %v1454, 0.0
      %v1524 = vadd.f32 %v1522, %v1523
      %v1525 = vsel %vm1078, %v1457, 0.0
      %v1526 = vadd.f32 %v1524, %v1525
      %v1527 = vsel %vm1078, %v1462, 0.0
      %v1528 = vadd.f32 %v1526, %v1527
      %v1529 = vsel %vm1078, %v1465, 0.0
      %v1530 = vadd.f32 %v1528, %v1529
      %v1531 = vrot.slane %v1530, 4
      %v1532 = vadd.f32 %v1530, %v1531
      %v1533 = vrot.slane %v1532, 2
      %v1534 = vadd.f32 %v1532, %v1533
      %v1535 = vrot.slane %v1534, 1
      %v1536 = vadd.f32 %v1534, %v1535
      %v1537 = vmul.f32 %v1342, %v1342
      %v1538 = vmul.f32 %v1345, %v1345
      %v1539 = vmul.f32 %v1350, %v1350
      %v1540 = vmul.f32 %v1353, %v1353
      %v1541 = vmul.f32 %v1358, %v1358
      %v1542 = vmul.f32 %v1361, %v1361
      %v1543 = vmul.f32 %v1366, %v1366
      %v1544 = vmul.f32 %v1369, %v1369
      %v1545 = vmul.f32 %v1374, %v1374
      %v1546 = vmul.f32 %v1377, %v1377
      %v1547 = vmul.f32 %v1382, %v1382
      %v1548 = vmul.f32 %v1385, %v1385
      %v1549 = vmul.f32 %v1390, %v1390
      %v1550 = vmul.f32 %v1393, %v1393
      %v1551 = vmul.f32 %v1398, %v1398
      %v1552 = vmul.f32 %v1401, %v1401
      %v1553 = vmul.f32 %v1406, %v1406
      %v1554 = vmul.f32 %v1409, %v1409
      %v1555 = vmul.f32 %v1414, %v1414
      %v1556 = vmul.f32 %v1417, %v1417
      %v1557 = vmul.f32 %v1422, %v1422
      %v1558 = vmul.f32 %v1425, %v1425
      %v1559 = vmul.f32 %v1430, %v1430
      %v1560 = vmul.f32 %v1433, %v1433
      %v1561 = vmul.f32 %v1438, %v1438
      %v1562 = vmul.f32 %v1441, %v1441
      %v1563 = vmul.f32 %v1446, %v1446
      %v1564 = vmul.f32 %v1449, %v1449
      %v1565 = vmul.f32 %v1454, %v1454
      %v1566 = vmul.f32 %v1457, %v1457
      %v1567 = vmul.f32 %v1462, %v1462
      %v1568 = vmul.f32 %v1465, %v1465
      %v1569 = vsel %vm1078, %v1537, 0.0
      %v1570 = vsel %vm1078, %v1538, 0.0
      %v1571 = vadd.f32 %v1569, %v1570
      %v1572 = vsel %vm1078, %v1539, 0.0
      %v1573 = vadd.f32 %v1571, %v1572
      %v1574 = vsel %vm1078, %v1540, 0.0
      %v1575 = vadd.f32 %v1573, %v1574
      %v1576 = vsel %vm1078, %v1541, 0.0
      %v1577 = vadd.f32 %v1575, %v1576
      %v1578 = vsel %vm1078, %v1542, 0.0
      %v1579 = vadd.f32 %v1577, %v1578
      %v1580 = vsel %vm1078, %v1543, 0.0
      %v1581 = vadd.f32 %v1579, %v1580
      %v1582 = vsel %vm1078, %v1544, 0.0
      %v1583 = vadd.f32 %v1581, %v1582
      %v1584 = vsel %vm1078, %v1545, 0.0
      %v1585 = vadd.f32 %v1583, %v1584
      %v1586 = vsel %vm1078, %v1546, 0.0
      %v1587 = vadd.f32 %v1585, %v1586
      %v1588 = vsel %vm1078, %v1547, 0.0
      %v1589 = vadd.f32 %v1587, %v1588
      %v1590 = vsel %vm1078, %v1548, 0.0
      %v1591 = vadd.f32 %v1589, %v1590
      %v1592 = vsel %vm1078, %v1549, 0.0
      %v1593 = vadd.f32 %v1591, %v1592
      %v1594 = vsel %vm1078, %v1550, 0.0
      %v1595 = vadd.f32 %v1593, %v1594
      %v1596 = vsel %vm1078, %v1551, 0.0
      %v1597 = vadd.f32 %v1595, %v1596
      %v1598 = vsel %vm1078, %v1552, 0.0
      %v1599 = vadd.f32 %v1597, %v1598
      %v1600 = vsel %vm1078, %v1553, 0.0
      %v1601 = vadd.f32 %v1599, %v1600
      %v1602 = vsel %vm1078, %v1554, 0.0
      %v1603 = vadd.f32 %v1601, %v1602
      %v1604 = vsel %vm1078, %v1555, 0.0
      %v1605 = vadd.f32 %v1603, %v1604
      %v1606 = vsel %vm1078, %v1556, 0.0
      %v1607 = vadd.f32 %v1605, %v1606
      %v1608 = vsel %vm1078, %v1557, 0.0
      %v1609 = vadd.f32 %v1607, %v1608
      %v1610 = vsel %vm1078, %v1558, 0.0
      %v1611 = vadd.f32 %v1609, %v1610
      %v1612 = vsel %vm1078, %v1559, 0.0
      %v1613 = vadd.f32 %v1611, %v1612
      %v1614 = vsel %vm1078, %v1560, 0.0
      %v1615 = vadd.f32 %v1613, %v1614
      %v1616 = vsel %vm1078, %v1561, 0.0
      %v1617 = vadd.f32 %v1615, %v1616
      %v1618 = vsel %vm1078, %v1562, 0.0
      %v1619 = vadd.f32 %v1617, %v1618
      %v1620 = vsel %vm1078, %v1563, 0.0
      %v1621 = vadd.f32 %v1619, %v1620
      %v1622 = vsel %vm1078, %v1564, 0.0
      %v1623 = vadd.f32 %v1621, %v1622
      %v1624 = vsel %vm1078, %v1565, 0.0
      %v1625 = vadd.f32 %v1623, %v1624
      %v1626 = vsel %vm1078, %v1566, 0.0
      %v1627 = vadd.f32 %v1625, %v1626
      %v1628 = vsel %vm1078, %v1567, 0.0
      %v1629 = vadd.f32 %v1627, %v1628
      %v1630 = vsel %vm1078, %v1568, 0.0
      %v1631 = vadd.f32 %v1629, %v1630
      %v1632 = vrot.slane %v1631, 4
      %v1633 = vadd.f32 %v1631, %v1632
      %v1634 = vrot.slane %v1633, 2
      %v1635 = vadd.f32 %v1633, %v1634
      %v1636 = vrot.slane %v1635, 1
      %v1637 = vadd.f32 %v1635, %v1636
      %v1638 = vld [vmem:[%s5] sm:$0xff]
      %v1639 = vld [vmem:[%s5 + $0x8] sm:$0xff]
      %v1641 = vsel %vm1078, %v1536, 0
      %1643 = vmatprep.subr.mxu0 0.0
      %1644 = vmatpush1.msra.mxu0 %v1638
      %1645 = vmatprep.subr.mxu0 0.0
      %1646 = vmatpush1.msra.mxu0 %v1639
      %1647 = vmatprep.subr.mxu0 0.0
      %1648 = vmatpush1.msra.mxu0 0.0
      %1649 = vmatprep.subr.mxu0 0.0
      %1650 = vmatpush1.msra.mxu0 0.0
      %1651 = vmatprep.subr.mxu0 0.0
      %1652 = vmatpush1.msra.mxu0 0.0
      %1653 = vmatprep.subr.mxu0 0.0
      %1654 = vmatpush1.msra.mxu0 0.0
      %1655 = vmatprep.subr.mxu0 0.0
      %1656 = vmatpush1.msra.mxu0 0.0
      %1657 = vmatprep.subr.mxu0 0.0
      %1658 = vmatpush1.msra.mxu0 0.0
      %1659 = vmatprep.subr.mxu0 0.0
      %1660 = vmatpush1.msra.mxu0 0.0
      %1661 = vmatprep.subr.mxu0 0.0
      %1662 = vmatpush1.msra.mxu0 0.0
      %1663 = vmatprep.subr.mxu0 0.0
      %1664 = vmatpush1.msra.mxu0 0.0
      %1665 = vmatprep.subr.mxu0 0.0
      %1666 = vmatpush1.msra.mxu0 0.0
      %1667 = vmatprep.subr.mxu0 0.0
      %1668 = vmatpush1.msra.mxu0 0.0
      %1669 = vmatprep.subr.mxu0 0.0
      %1670 = vmatpush1.msra.mxu0 0.0
      %1671 = vmatprep.subr.mxu0 0.0
      %1672 = vmatpush1.msra.mxu0 0.0
      %1673 = vmatprep.subr.mxu0 0.0
      %1674 = vmatpush1.msra.mxu0 0.0
      %1675 = vmatprep.subr.mxu0 0.0
      %1676 = vmatpush1.msra.mxu0 0.0
      %1677 = vmatprep.subr.mxu0 0.0
      %1678 = vmatpush1.msra.mxu0 0.0
      %1679 = vmatprep.subr.mxu0 0.0
      %1680 = vmatpush1.msra.mxu0 0.0
      %1681 = vmatprep.subr.mxu0 0.0
      %1682 = vmatpush1.msra.mxu0 0.0
      %1683 = vmatprep.subr.mxu0 0.0
      %1684 = vmatpush1.msra.mxu0 0.0
      %1685 = vmatprep.subr.mxu0 0.0
      %1686 = vmatpush1.msra.mxu0 0.0
      %1687 = vmatprep.subr.mxu0 0.0
      %1688 = vmatpush1.msra.mxu0 0.0
      %1689 = vmatprep.subr.mxu0 0.0
      %1690 = vmatpush1.msra.mxu0 0.0
      %1691 = vmatprep.subr.mxu0 0.0
      %1692 = vmatpush1.msra.mxu0 0.0
      %1693 = vmatprep.subr.mxu0 0.0
      %1694 = vmatpush1.msra.mxu0 0.0
      %1695 = vmatprep.subr.mxu0 0.0
      %1696 = vmatpush1.msra.mxu0 0.0
      %1697 = vmatprep.subr.mxu0 0.0
      %1698 = vmatpush1.msra.mxu0 0.0
      %1699 = vmatprep.subr.mxu0 0.0
      %1700 = vmatpush1.msra.mxu0 0.0
      %1701 = vmatprep.subr.mxu0 0.0
      %1702 = vmatpush1.msra.mxu0 0.0
      %1703 = vmatprep.subr.mxu0 0.0
      %1704 = vmatpush1.msra.mxu0 0.0
      %1705 = vmatprep.subr.mxu0 0.0
      %1706 = vmatpush1.msra.mxu0 0.0
      %1707 = vmatprep.mubr.f32.mxu0 0.0
      %1708 = vmatmul.mubr.f32.gmra.mrb[0].mxu0 %v1641
      %v1709 = vpop.f32.mrb[0].mxu0
      %v1710 = vadd.f32 0.0, %v1709
      %v1711 = vpop.f32.mrb[0].mxu0
      %1712 = vdwg.mxu0
      %v1713 = vmul.f32 %v1710, 0.00390625
      %v1715 = vsel %vm1078, %v1637, 0
      %1717 = vmatprep.subr.mxu0 0.0
      %1718 = vmatpush1.msra.mxu0 %v1638
      %1719 = vmatprep.subr.mxu0 0.0
      %1720 = vmatpush1.msra.mxu0 %v1639
      %1721 = vmatprep.subr.mxu0 0.0
      %1722 = vmatpush1.msra.mxu0 0.0
      %1723 = vmatprep.subr.mxu0 0.0
      %1724 = vmatpush1.msra.mxu0 0.0
      %1725 = vmatprep.subr.mxu0 0.0
      %1726 = vmatpush1.msra.mxu0 0.0
      %1727 = vmatprep.subr.mxu0 0.0
      %1728 = vmatpush1.msra.mxu0 0.0
      %1729 = vmatprep.subr.mxu0 0.0
      %1730 = vmatpush1.msra.mxu0 0.0
      %1731 = vmatprep.subr.mxu0 0.0
      %1732 = vmatpush1.msra.mxu0 0.0
      %1733 = vmatprep.subr.mxu0 0.0
      %1734 = vmatpush1.msra.mxu0 0.0
      %1735 = vmatprep.subr.mxu0 0.0
      %1736 = vmatpush1.msra.mxu0 0.0
      %1737 = vmatprep.subr.mxu0 0.0
      %1738 = vmatpush1.msra.mxu0 0.0
      %1739 = vmatprep.subr.mxu0 0.0
      %1740 = vmatpush1.msra.mxu0 0.0
      %1741 = vmatprep.subr.mxu0 0.0
      %1742 = vmatpush1.msra.mxu0 0.0
      %1743 = vmatprep.subr.mxu0 0.0
      %1744 = vmatpush1.msra.mxu0 0.0
      %1745 = vmatprep.subr.mxu0 0.0
      %1746 = vmatpush1.msra.mxu0 0.0
      %1747 = vmatprep.subr.mxu0 0.0
      %1748 = vmatpush1.msra.mxu0 0.0
      %1749 = vmatprep.subr.mxu0 0.0
      %1750 = vmatpush1.msra.mxu0 0.0
      %1751 = vmatprep.subr.mxu0 0.0
      %1752 = vmatpush1.msra.mxu0 0.0
      %1753 = vmatprep.subr.mxu0 0.0
      %1754 = vmatpush1.msra.mxu0 0.0
      %1755 = vmatprep.subr.mxu0 0.0
      %1756 = vmatpush1.msra.mxu0 0.0
      %1757 = vmatprep.subr.mxu0 0.0
      %1758 = vmatpush1.msra.mxu0 0.0
      %1759 = vmatprep.subr.mxu0 0.0
      %1760 = vmatpush1.msra.mxu0 0.0
      %1761 = vmatprep.subr.mxu0 0.0
      %1762 = vmatpush1.msra.mxu0 0.0
      %1763 = vmatprep.subr.mxu0 0.0
      %1764 = vmatpush1.msra.mxu0 0.0
      %1765 = vmatprep.subr.mxu0 0.0
      %1766 = vmatpush1.msra.mxu0 0.0
      %1767 = vmatprep.subr.mxu0 0.0
      %1768 = vmatpush1.msra.mxu0 0.0
      %1769 = vmatprep.subr.mxu0 0.0
      %1770 = vmatpush1.msra.mxu0 0.0
      %1771 = vmatprep.subr.mxu0 0.0
      %1772 = vmatpush1.msra.mxu0 0.0
      %1773 = vmatprep.subr.mxu0 0.0
      %1774 = vmatpush1.msra.mxu0 0.0
      %1775 = vmatprep.subr.mxu0 0.0
      %1776 = vmatpush1.msra.mxu0 0.0
      %1777 = vmatprep.subr.mxu0 0.0
      %1778 = vmatpush1.msra.mxu0 0.0
      %1779 = vmatprep.subr.mxu0 0.0
      %1780 = vmatpush1.msra.mxu0 0.0
      %1781 = vmatprep.mubr.f32.mxu0 0.0
      %1782 = vmatmul.mubr.f32.gmra.mrb[0].mxu0 %v1715
      %v1783 = vpop.f32.mrb[0].mxu0
      %v1784 = vadd.f32 0.0, %v1783
      %v1785 = vpop.f32.mrb[0].mxu0
      %1786 = vdwg.mxu0
      %v1787 = vmul.f32 %v1784, 0.00390625
      %v1788 = vmul.f32 %v1713, %v1713
      %v1789 = vsub.f32 %v1787, %v1788
      %v1790 = vmax.f32 %v1789, 0.0
      %v1791 = vadd.f32 %v1790, 1e-05
      %v1792 = vrsqrt.pop %v1791
      %v1793 = vld [vmem:[%s3] sm:$0x1]
      %v1794 = vmul.f32 %v1792, %v1793
      %v1795 = vld [vmem:[%s4] sm:$0x1]
      %v1796 = vmul.f32 %v1713, %v1794
      %v1797 = vsub.f32 %v1795, %v1796
      %1798 = vst.msk [vmem:[#allocation2] sm:$0xff] %vm1078, %v1342
      %1799 = vst.msk [vmem:[#allocation2 + $0x8] sm:$0xff] %vm1078, %v1345
      %1800 = vst.msk [vmem:[#allocation2 + $0x10] sm:$0xff] %vm1078, %v1350
      %1801 = vst.msk [vmem:[#allocation2 + $0x18] sm:$0xff] %vm1078, %v1353
      %1802 = vst.msk [vmem:[#allocation2 + $0x20] sm:$0xff] %vm1078, %v1358
      %1803 = vst.msk [vmem:[#allocation2 + $0x28] sm:$0xff] %vm1078, %v1361
      %1804 = vst.msk [vmem:[#allocation2 + $0x30] sm:$0xff] %vm1078, %v1366
      %1805 = vst.msk [vmem:[#allocation2 + $0x38] sm:$0xff] %vm1078, %v1369
      %1806 = vst.msk [vmem:[#allocation2 + $0x40] sm:$0xff] %vm1078, %v1374
      %1807 = vst.msk [vmem:[#allocation2 + $0x48] sm:$0xff] %vm1078, %v1377
      %1808 = vst.msk [vmem:[#allocation2 + $0x50] sm:$0xff] %vm1078, %v1382
      %1809 = vst.msk [vmem:[#allocation2 + $0x58] sm:$0xff] %vm1078, %v1385
      %1810 = vst.msk [vmem:[#allocation2 + $0x60] sm:$0xff] %vm1078, %v1390
      %1811 = vst.msk [vmem:[#allocation2 + $0x68] sm:$0xff] %vm1078, %v1393
      %1812 = vst.msk [vmem:[#allocation2 + $0x70] sm:$0xff] %vm1078, %v1398
      %1813 = vst.msk [vmem:[#allocation2 + $0x78] sm:$0xff] %vm1078, %v1401
      %1814 = vst.msk [vmem:[#allocation2 + $0x80] sm:$0xff] %vm1078, %v1406
      %1815 = vst.msk [vmem:[#allocation2 + $0x88] sm:$0xff] %vm1078, %v1409
      %1816 = vst.msk [vmem:[#allocation2 + $0x90] sm:$0xff] %vm1078, %v1414
      %1817 = vst.msk [vmem:[#allocation2 + $0x98] sm:$0xff] %vm1078, %v1417
      %1818 = vst.msk [vmem:[#allocation2 + $0xa0] sm:$0xff] %vm1078, %v1422
      %1819 = vst.msk [vmem:[#allocation2 + $0xa8] sm:$0xff] %vm1078, %v1425
      %1820 = vst.msk [vmem:[#allocation2 + $0xb0] sm:$0xff] %vm1078, %v1430
      %1821 = vst.msk [vmem:[#allocation2 + $0xb8] sm:$0xff] %vm1078, %v1433
      %1822 = vst.msk [vmem:[#allocation2 + $0xc0] sm:$0xff] %vm1078, %v1438
      %1823 = vst.msk [vmem:[#allocation2 + $0xc8] sm:$0xff] %vm1078, %v1441
      %1824 = vst.msk [vmem:[#allocation2 + $0xd0] sm:$0xff] %vm1078, %v1446
      %1825 = vst.msk [vmem:[#allocation2 + $0xd8] sm:$0xff] %vm1078, %v1449
      %1826 = vst.msk [vmem:[#allocation2 + $0xe0] sm:$0xff] %vm1078, %v1454
      %1827 = vst.msk [vmem:[#allocation2 + $0xe8] sm:$0xff] %vm1078, %v1457
      %1828 = vst.msk [vmem:[#allocation2 + $0xf0] sm:$0xff] %vm1078, %v1462
      %1829 = vst.msk [vmem:[#allocation2 + $0xf8] sm:$0xff] %vm1078, %v1465
      %v1830 = vld [vmem:[#allocation2] sm:$0xff]
      %v1831 = vld [vmem:[#allocation2 + $0x8] sm:$0xff]
      %v1832 = vld [vmem:[#allocation2 + $0x10] sm:$0xff]
      %v1833 = vld [vmem:[#allocation2 + $0x18] sm:$0xff]
      %v1834 = vld [vmem:[#allocation2 + $0x20] sm:$0xff]
      %v1835 = vld [vmem:[#allocation2 + $0x28] sm:$0xff]
      %v1836 = vld [vmem:[#allocation2 + $0x30] sm:$0xff]
      %v1837 = vld [vmem:[#allocation2 + $0x38] sm:$0xff]
      %v1838 = vld [vmem:[#allocation2 + $0x40] sm:$0xff]
      %v1839 = vld [vmem:[#allocation2 + $0x48] sm:$0xff]
      %v1840 = vld [vmem:[#allocation2 + $0x50] sm:$0xff]
      %v1841 = vld [vmem:[#allocation2 + $0x58] sm:$0xff]
      %v1842 = vld [vmem:[#allocation2 + $0x60] sm:$0xff]
      %v1843 = vld [vmem:[#allocation2 + $0x68] sm:$0xff]
      %v1844 = vld [vmem:[#allocation2 + $0x70] sm:$0xff]
      %v1845 = vld [vmem:[#allocation2 + $0x78] sm:$0xff]
      %v1846 = vld [vmem:[#allocation2 + $0x80] sm:$0xff]
      %v1847 = vld [vmem:[#allocation2 + $0x88] sm:$0xff]
      %v1848 = vld [vmem:[#allocation2 + $0x90] sm:$0xff]
      %v1849 = vld [vmem:[#allocation2 + $0x98] sm:$0xff]
      %v1850 = vld [vmem:[#allocation2 + $0xa0] sm:$0xff]
      %v1851 = vld [vmem:[#allocation2 + $0xa8] sm:$0xff]
      %v1852 = vld [vmem:[#allocation2 + $0xb0] sm:$0xff]
      %v1853 = vld [vmem:[#allocation2 + $0xb8] sm:$0xff]
      %v1854 = vld [vmem:[#allocation2 + $0xc0] sm:$0xff]
      %v1855 = vld [vmem:[#allocation2 + $0xc8] sm:$0xff]
      %v1856 = vld [vmem:[#allocation2 + $0xd0] sm:$0xff]
      %v1857 = vld [vmem:[#allocation2 + $0xd8] sm:$0xff]
      %v1858 = vld [vmem:[#allocation2 + $0xe0] sm:$0xff]
      %v1859 = vld [vmem:[#allocation2 + $0xe8] sm:$0xff]
      %v1860 = vld [vmem:[#allocation2 + $0xf0] sm:$0xff]
      %v1861 = vld [vmem:[#allocation2 + $0xf8] sm:$0xff]
      %v1862 = vlaneseq
      %v1863 = vshrl.u32 %v1862, 7
      %v1864 = vsub.s32 0, %v1863
      %v1865 = vrot.slane %v1794, %v1864
      %v1866 = vmul.f32 %v1830, %v1865
      %v1867 = vmul.f32 %v1831, %v1865
      %v1868 = vmul.f32 %v1832, %v1865
      %v1869 = vmul.f32 %v1833, %v1865
      %v1870 = vmul.f32 %v1834, %v1865
      %v1871 = vmul.f32 %v1835, %v1865
      %v1872 = vmul.f32 %v1836, %v1865
      %v1873 = vmul.f32 %v1837, %v1865
      %v1874 = vmul.f32 %v1838, %v1865
      %v1875 = vmul.f32 %v1839, %v1865
      %v1876 = vmul.f32 %v1840, %v1865
      %v1877 = vmul.f32 %v1841, %v1865
      %v1878 = vmul.f32 %v1842, %v1865
      %v1879 = vmul.f32 %v1843, %v1865
      %v1880 = vmul.f32 %v1844, %v1865
      %v1881 = vmul.f32 %v1845, %v1865
      %v1882 = vmul.f32 %v1846, %v1865
      %v1883 = vmul.f32 %v1847, %v1865
      %v1884 = vmul.f32 %v1848, %v1865
      %v1885 = vmul.f32 %v1849, %v1865
      %v1886 = vmul.f32 %v1850, %v1865
      %v1887 = vmul.f32 %v1851, %v1865
      %v1888 = vmul.f32 %v1852, %v1865
      %v1889 = vmul.f32 %v1853, %v1865
      %v1890 = vmul.f32 %v1854, %v1865
      %v1891 = vmul.f32 %v1855, %v1865
      %v1892 = vmul.f32 %v1856, %v1865
      %v1893 = vmul.f32 %v1857, %v1865
      %v1894 = vmul.f32 %v1858, %v1865
      %v1895 = vmul.f32 %v1859, %v1865
      %v1896 = vmul.f32 %v1860, %v1865
      %v1897 = vmul.f32 %v1861, %v1865
      %v1899 = vlaneseq
      %v1900 = vshrl.u32 %v1899, 7
      %v1901 = vsub.s32 0, %v1900
      %v1902 = vrot.slane %v1797, %v1901
      %v1904 = vadd.f32 %v1866, %v1902
      %v1905 = vadd.f32 %v1867, %v1902
      %v1906 = vadd.f32 %v1868, %v1902
      %v1907 = vadd.f32 %v1869, %v1902
      %v1908 = vadd.f32 %v1870, %v1902
      %v1909 = vadd.f32 %v1871, %v1902
      %v1910 = vadd.f32 %v1872, %v1902
      %v1911 = vadd.f32 %v1873, %v1902
      %v1912 = vadd.f32 %v1874, %v1902
      %v1913 = vadd.f32 %v1875, %v1902
      %v1914 = vadd.f32 %v1876, %v1902
      %v1915 = vadd.f32 %v1877, %v1902
      %v1916 = vadd.f32 %v1878, %v1902
      %v1917 = vadd.f32 %v1879, %v1902
      %v1918 = vadd.f32 %v1880, %v1902
      %v1919 = vadd.f32 %v1881, %v1902
      %v1920 = vadd.f32 %v1882, %v1902
      %v1921 = vadd.f32 %v1883, %v1902
      %v1922 = vadd.f32 %v1884, %v1902
      %v1923 = vadd.f32 %v1885, %v1902
      %v1924 = vadd.f32 %v1886, %v1902
      %v1925 = vadd.f32 %v1887, %v1902
      %v1926 = vadd.f32 %v1888, %v1902
      %v1927 = vadd.f32 %v1889, %v1902
      %v1928 = vadd.f32 %v1890, %v1902
      %v1929 = vadd.f32 %v1891, %v1902
      %v1930 = vadd.f32 %v1892, %v1902
      %v1931 = vadd.f32 %v1893, %v1902
      %v1932 = vadd.f32 %v1894, %v1902
      %v1933 = vadd.f32 %v1895, %v1902
      %v1934 = vadd.f32 %v1896, %v1902
      %v1935 = vadd.f32 %v1897, %v1902
      %vm1936 = vcmp.gt.f32.partialorder %v1904, 0.0
      %vm1937 = vcmp.gt.f32.partialorder %v1905, 0.0
      %vm1938 = vcmp.gt.f32.partialorder %v1906, 0.0
      %vm1939 = vcmp.gt.f32.partialorder %v1907, 0.0
      %vm1940 = vcmp.gt.f32.partialorder %v1908, 0.0
      %vm1941 = vcmp.gt.f32.partialorder %v1909, 0.0
      %vm1942 = vcmp.gt.f32.partialorder %v1910, 0.0
      %vm1943 = vcmp.gt.f32.partialorder %v1911, 0.0
      %vm1944 = vcmp.gt.f32.partialorder %v1912, 0.0
      %vm1945 = vcmp.gt.f32.partialorder %v1913, 0.0
      %vm1946 = vcmp.gt.f32.partialorder %v1914, 0.0
      %vm1947 = vcmp.gt.f32.partialorder %v1915, 0.0
      %vm1948 = vcmp.gt.f32.partialorder %v1916, 0.0
      %vm1949 = vcmp.gt.f32.partialorder %v1917, 0.0
      %vm1950 = vcmp.gt.f32.partialorder %v1918, 0.0
      %vm1951 = vcmp.gt.f32.partialorder %v1919, 0.0
      %vm1952 = vcmp.gt.f32.partialorder %v1920, 0.0
      %vm1953 = vcmp.gt.f32.partialorder %v1921, 0.0
      %vm1954 = vcmp.gt.f32.partialorder %v1922, 0.0
      %vm1955 = vcmp.gt.f32.partialorder %v1923, 0.0
      %vm1956 = vcmp.gt.f32.partialorder %v1924, 0.0
      %vm1957 = vcmp.gt.f32.partialorder %v1925, 0.0
      %vm1958 = vcmp.gt.f32.partialorder %v1926, 0.0
      %vm1959 = vcmp.gt.f32.partialorder %v1927, 0.0
      %vm1960 = vcmp.gt.f32.partialorder %v1928, 0.0
      %vm1961 = vcmp.gt.f32.partialorder %v1929, 0.0
      %vm1962 = vcmp.gt.f32.partialorder %v1930, 0.0
      %vm1963 = vcmp.gt.f32.partialorder %v1931, 0.0
      %vm1964 = vcmp.gt.f32.partialorder %v1932, 0.0
      %vm1965 = vcmp.gt.f32.partialorder %v1933, 0.0
      %vm1966 = vcmp.gt.f32.partialorder %v1934, 0.0
      %vm1967 = vcmp.gt.f32.partialorder %v1935, 0.0
      %v1968 = vmin.f32 %v1904, 0.0
      %v1969 = vmin.f32 %v1905, 0.0
      %v1970 = vmin.f32 %v1906, 0.0
      %v1971 = vmin.f32 %v1907, 0.0
      %v1972 = vmin.f32 %v1908, 0.0
      %v1973 = vmin.f32 %v1909, 0.0
      %v1974 = vmin.f32 %v1910, 0.0
      %v1975 = vmin.f32 %v1911, 0.0
      %v1976 = vmin.f32 %v1912, 0.0
      %v1977 = vmin.f32 %v1913, 0.0
      %v1978 = vmin.f32 %v1914, 0.0
      %v1979 = vmin.f32 %v1915, 0.0
      %v1980 = vmin.f32 %v1916, 0.0
      %v1981 = vmin.f32 %v1917, 0.0
      %v1982 = vmin.f32 %v1918, 0.0
      %v1983 = vmin.f32 %v1919, 0.0
      %v1984 = vmin.f32 %v1920, 0.0
      %v1985 = vmin.f32 %v1921, 0.0
      %v1986 = vmin.f32 %v1922, 0.0
      %v1987 = vmin.f32 %v1923, 0.0
      %v1988 = vmin.f32 %v1924, 0.0
      %v1989 = vmin.f32 %v1925, 0.0
      %v1990 = vmin.f32 %v1926, 0.0
      %v1991 = vmin.f32 %v1927, 0.0
      %v1992 = vmin.f32 %v1928, 0.0
      %v1993 = vmin.f32 %v1929, 0.0
      %v1994 = vmin.f32 %v1930, 0.0
      %v1995 = vmin.f32 %v1931, 0.0
      %v1996 = vmin.f32 %v1932, 0.0
      %v1997 = vmin.f32 %v1933, 0.0
      %v1998 = vmin.f32 %v1934, 0.0
      %v1999 = vmin.f32 %v1935, 0.0
      %v2000 = vmul.f32 %v1968, 1.442695
      %v2001 = vpow.pop %v2000
      %v2002 = vmul.f32 %v1969, 1.442695
      %v2003 = vpow.pop %v2002
      %v2004 = vmul.f32 %v1970, 1.442695
      %v2005 = vpow.pop %v2004
      %v2006 = vmul.f32 %v1971, 1.442695
      %v2007 = vpow.pop %v2006
      %v2008 = vmul.f32 %v1972, 1.442695
      %v2009 = vpow.pop %v2008
      %v2010 = vmul.f32 %v1973, 1.442695
      %v2011 = vpow.pop %v2010
      %v2012 = vmul.f32 %v1974, 1.442695
      %v2013 = vpow.pop %v2012
      %v2014 = vmul.f32 %v1975, 1.442695
      %v2015 = vpow.pop %v2014
      %v2016 = vmul.f32 %v1976, 1.442695
      %v2017 = vpow.pop %v2016
      %v2018 = vmul.f32 %v1977, 1.442695
      %v2019 = vpow.pop %v2018
      %v2020 = vmul.f32 %v1978, 1.442695
      %v2021 = vpow.pop %v2020
      %v2022 = vmul.f32 %v1979, 1.442695
      %v2023 = vpow.pop %v2022
      %v2024 = vmul.f32 %v1980, 1.442695
      %v2025 = vpow.pop %v2024
      %v2026 = vmul.f32 %v1981, 1.442695
      %v2027 = vpow.pop %v2026
      %v2028 = vmul.f32 %v1982, 1.442695
      %v2029 = vpow.pop %v2028
      %v2030 = vmul.f32 %v1983, 1.442695
      %v2031 = vpow.pop %v2030
      %v2032 = vmul.f32 %v1984, 1.442695
      %v2033 = vpow.pop %v2032
      %v2034 = vmul.f32 %v1985, 1.442695
      %v2035 = vpow.pop %v2034
      %v2036 = vmul.f32 %v1986, 1.442695
      %v2037 = vpow.pop %v2036
      %v2038 = vmul.f32 %v1987, 1.442695
      %v2039 = vpow.pop %v2038
      %v2040 = vmul.f32 %v1988, 1.442695
      %v2041 = vpow.pop %v2040
      %v2042 = vmul.f32 %v1989, 1.442695
      %v2043 = vpow.pop %v2042
      %v2044 = vmul.f32 %v1990, 1.442695
      %v2045 = vpow.pop %v2044
      %v2046 = vmul.f32 %v1991, 1.442695
      %v2047 = vpow.pop %v2046
      %v2048 = vmul.f32 %v1992, 1.442695
      %v2049 = vpow.pop %v2048
      %v2050 = vmul.f32 %v1993, 1.442695
      %v2051 = vpow.pop %v2050
      %v2052 = vmul.f32 %v1994, 1.442695
      %v2053 = vpow.pop %v2052
      %v2054 = vmul.f32 %v1995, 1.442695
      %v2055 = vpow.pop %v2054
      %v2056 = vmul.f32 %v1996, 1.442695
      %v2057 = vpow.pop %v2056
      %v2058 = vmul.f32 %v1997, 1.442695
      %v2059 = vpow.pop %v2058
      %v2060 = vmul.f32 %v1998, 1.442695
      %v2061 = vpow.pop %v2060
      %v2062 = vmul.f32 %v1999, 1.442695
      %v2063 = vpow.pop %v2062
      %v2064 = vsub.f32 %v2001, 1.0
      %v2065 = vsub.f32 %v2003, 1.0
      %v2066 = vsub.f32 %v2005, 1.0
      %v2067 = vsub.f32 %v2007, 1.0
      %v2068 = vsub.f32 %v2009, 1.0
      %v2069 = vsub.f32 %v2011, 1.0
      %v2070 = vsub.f32 %v2013, 1.0
      %v2071 = vsub.f32 %v2015, 1.0
      %v2072 = vsub.f32 %v2017, 1.0
      %v2073 = vsub.f32 %v2019, 1.0
      %v2074 = vsub.f32 %v2021, 1.0
      %v2075 = vsub.f32 %v2023, 1.0
      %v2076 = vsub.f32 %v2025, 1.0
      %v2077 = vsub.f32 %v2027, 1.0
      %v2078 = vsub.f32 %v2029, 1.0
      %v2079 = vsub.f32 %v2031, 1.0
      %v2080 = vsub.f32 %v2033, 1.0
      %v2081 = vsub.f32 %v2035, 1.0
      %v2082 = vsub.f32 %v2037, 1.0
      %v2083 = vsub.f32 %v2039, 1.0
      %v2084 = vsub.f32 %v2041, 1.0
      %v2085 = vsub.f32 %v2043, 1.0
      %v2086 = vsub.f32 %v2045, 1.0
      %v2087 = vsub.f32 %v2047, 1.0
      %v2088 = vsub.f32 %v2049, 1.0
      %v2089 = vsub.f32 %v2051, 1.0
      %v2090 = vsub.f32 %v2053, 1.0
      %v2091 = vsub.f32 %v2055, 1.0
      %v2092 = vsub.f32 %v2057, 1.0
      %v2093 = vsub.f32 %v2059, 1.0
      %v2094 = vsub.f32 %v2061, 1.0
      %v2095 = vsub.f32 %v2063, 1.0
      %v2096 = vsel %vm1936, %v1904, %v2064
      %v2097 = vsel %vm1937, %v1905, %v2065
      %v2098 = vsel %vm1938, %v1906, %v2066
      %v2099 = vsel %vm1939, %v1907, %v2067
      %v2100 = vsel %vm1940, %v1908, %v2068
      %v2101 = vsel %vm1941, %v1909, %v2069
      %v2102 = vsel %vm1942, %v1910, %v2070
      %v2103 = vsel %vm1943, %v1911, %v2071
      %v2104 = vsel %vm1944, %v1912, %v2072
      %v2105 = vsel %vm1945, %v1913, %v2073
      %v2106 = vsel %vm1946, %v1914, %v2074
      %v2107 = vsel %vm1947, %v1915, %v2075
      %v2108 = vsel %vm1948, %v1916, %v2076
      %v2109 = vsel %vm1949, %v1917, %v2077
      %v2110 = vsel %vm1950, %v1918, %v2078
      %v2111 = vsel %vm1951, %v1919, %v2079
      %v2112 = vsel %vm1952, %v1920, %v2080
      %v2113 = vsel %vm1953, %v1921, %v2081
      %v2114 = vsel %vm1954, %v1922, %v2082
      %v2115 = vsel %vm1955, %v1923, %v2083
      %v2116 = vsel %vm1956, %v1924, %v2084
      %v2117 = vsel %vm1957, %v1925, %v2085
      %v2118 = vsel %vm1958, %v1926, %v2086
      %v2119 = vsel %vm1959, %v1927, %v2087
      %v2120 = vsel %vm1960, %v1928, %v2088
      %v2121 = vsel %vm1961, %v1929, %v2089
      %v2122 = vsel %vm1962, %v1930, %v2090
      %v2123 = vsel %vm1963, %v1931, %v2091
      %v2124 = vsel %vm1964, %v1932, %v2092
      %v2125 = vsel %vm1965, %v1933, %v2093
      %v2126 = vsel %vm1966, %v1934, %v2094
      %v2127 = vsel %vm1967, %v1935, %v2095
      %2160 = vrot.lane.b32.xlu0 %v2096, 124
      %v2161 = vpop.permute.xlu0 %2160
      %2162 = vrot.lane.b32.xlu0 %v2097, 124
      %v2163 = vpop.permute.xlu0 %2162
      %2164 = vrot.lane.b32.xlu0 %v2098, 124
      %v2165 = vpop.permute.xlu0 %2164
      %2166 = vrot.lane.b32.xlu0 %v2099, 124
      %v2167 = vpop.permute.xlu0 %2166
      %2168 = vrot.lane.b32.xlu0 %v2100, 124
      %v2169 = vpop.permute.xlu0 %2168
      %2170 = vrot.lane.b32.xlu0 %v2101, 124
      %v2171 = vpop.permute.xlu0 %2170
      %2172 = vrot.lane.b32.xlu0 %v2102, 124
      %v2173 = vpop.permute.xlu0 %2172
      %2174 = vrot.lane.b32.xlu0 %v2103, 124
      %v2175 = vpop.permute.xlu0 %2174
      %2176 = vrot.lane.b32.xlu0 %v2104, 124
      %v2177 = vpop.permute.xlu0 %2176
      %2178 = vrot.lane.b32.xlu0 %v2105, 124
      %v2179 = vpop.permute.xlu0 %2178
      %2180 = vrot.lane.b32.xlu0 %v2106, 124
      %v2181 = vpop.permute.xlu0 %2180
      %2182 = vrot.lane.b32.xlu0 %v2107, 124
      %v2183 = vpop.permute.xlu0 %2182
      %2184 = vrot.lane.b32.xlu0 %v2108, 124
      %v2185 = vpop.permute.xlu0 %2184
      %2186 = vrot.lane.b32.xlu0 %v2109, 124
      %v2187 = vpop.permute.xlu0 %2186
      %2188 = vrot.lane.b32.xlu0 %v2110, 124
      %v2189 = vpop.permute.xlu0 %2188
      %2190 = vrot.lane.b32.xlu0 %v2111, 124
      %v2191 = vpop.permute.xlu0 %2190
      %2192 = vrot.lane.b32.xlu0 %v2112, 124
      %v2193 = vpop.permute.xlu0 %2192
      %2194 = vrot.lane.b32.xlu0 %v2113, 124
      %v2195 = vpop.permute.xlu0 %2194
      %2196 = vrot.lane.b32.xlu0 %v2114, 124
      %v2197 = vpop.permute.xlu0 %2196
      %2198 = vrot.lane.b32.xlu0 %v2115, 124
      %v2199 = vpop.permute.xlu0 %2198
      %2200 = vrot.lane.b32.xlu0 %v2116, 124
      %v2201 = vpop.permute.xlu0 %2200
      %2202 = vrot.lane.b32.xlu0 %v2117, 124
      %v2203 = vpop.permute.xlu0 %2202
      %2204 = vrot.lane.b32.xlu0 %v2118, 124
      %v2205 = vpop.permute.xlu0 %2204
      %2206 = vrot.lane.b32.xlu0 %v2119, 124
      %v2207 = vpop.permute.xlu0 %2206
      %2208 = vrot.lane.b32.xlu0 %v2120, 124
      %v2209 = vpop.permute.xlu0 %2208
      %2210 = vrot.lane.b32.xlu0 %v2121, 124
      %v2211 = vpop.permute.xlu0 %2210
      %2212 = vrot.lane.b32.xlu0 %v2122, 124
      %v2213 = vpop.permute.xlu0 %2212
      %2214 = vrot.lane.b32.xlu0 %v2123, 124
      %v2215 = vpop.permute.xlu0 %2214
      %2216 = vrot.lane.b32.xlu0 %v2124, 124
      %v2217 = vpop.permute.xlu0 %2216
      %2218 = vrot.lane.b32.xlu0 %v2125, 124
      %v2219 = vpop.permute.xlu0 %2218
      %2220 = vrot.lane.b32.xlu0 %v2126, 124
      %v2221 = vpop.permute.xlu0 %2220
      %2222 = vrot.lane.b32.xlu0 %v2127, 124
      %v2223 = vpop.permute.xlu0 %2222
      %v2256 = vadd.f32 %v2096, %v2161
      %v2257 = vadd.f32 %v2097, %v2163
      %v2258 = vadd.f32 %v2098, %v2165
      %v2259 = vadd.f32 %v2099, %v2167
      %v2260 = vadd.f32 %v2100, %v2169
      %v2261 = vadd.f32 %v2101, %v2171
      %v2262 = vadd.f32 %v2102, %v2173
      %v2263 = vadd.f32 %v2103, %v2175
      %v2264 = vadd.f32 %v2104, %v2177
      %v2265 = vadd.f32 %v2105, %v2179
      %v2266 = vadd.f32 %v2106, %v2181
      %v2267 = vadd.f32 %v2107, %v2183
      %v2268 = vadd.f32 %v2108, %v2185
      %v2269 = vadd.f32 %v2109, %v2187
      %v2270 = vadd.f32 %v2110, %v2189
      %v2271 = vadd.f32 %v2111, %v2191
      %v2272 = vadd.f32 %v2112, %v2193
      %v2273 = vadd.f32 %v2113, %v2195
      %v2274 = vadd.f32 %v2114, %v2197
      %v2275 = vadd.f32 %v2115, %v2199
      %v2276 = vadd.f32 %v2116, %v2201
      %v2277 = vadd.f32 %v2117, %v2203
      %v2278 = vadd.f32 %v2118, %v2205
      %v2279 = vadd.f32 %v2119, %v2207
      %v2280 = vadd.f32 %v2120, %v2209
      %v2281 = vadd.f32 %v2121, %v2211
      %v2282 = vadd.f32 %v2122, %v2213
      %v2283 = vadd.f32 %v2123, %v2215
      %v2284 = vadd.f32 %v2124, %v2217
      %v2285 = vadd.f32 %v2125, %v2219
      %v2286 = vadd.f32 %v2126, %v2221
      %v2287 = vadd.f32 %v2127, %v2223
      %v2288 = vmul.f32 %v2256, 0.5
      %v2289 = vmul.f32 %v2257, 0.5
      %v2290 = vmul.f32 %v2258, 0.5
      %v2291 = vmul.f32 %v2259, 0.5
      %v2292 = vmul.f32 %v2260, 0.5
      %v2293 = vmul.f32 %v2261, 0.5
      %v2294 = vmul.f32 %v2262, 0.5
      %v2295 = vmul.f32 %v2263, 0.5
      %v2296 = vmul.f32 %v2264, 0.5
      %v2297 = vmul.f32 %v2265, 0.5
      %v2298 = vmul.f32 %v2266, 0.5
      %v2299 = vmul.f32 %v2267, 0.5
      %v2300 = vmul.f32 %v2268, 0.5
      %v2301 = vmul.f32 %v2269, 0.5
      %v2302 = vmul.f32 %v2270, 0.5
      %v2303 = vmul.f32 %v2271, 0.5
      %v2304 = vmul.f32 %v2272, 0.5
      %v2305 = vmul.f32 %v2273, 0.5
      %v2306 = vmul.f32 %v2274, 0.5
      %v2307 = vmul.f32 %v2275, 0.5
      %v2308 = vmul.f32 %v2276, 0.5
      %v2309 = vmul.f32 %v2277, 0.5
      %v2310 = vmul.f32 %v2278, 0.5
      %v2311 = vmul.f32 %v2279, 0.5
      %v2312 = vmul.f32 %v2280, 0.5
      %v2313 = vmul.f32 %v2281, 0.5
      %v2314 = vmul.f32 %v2282, 0.5
      %v2315 = vmul.f32 %v2283, 0.5
      %v2316 = vmul.f32 %v2284, 0.5
      %v2317 = vmul.f32 %v2285, 0.5
      %v2318 = vmul.f32 %v2286, 0.5
      %v2319 = vmul.f32 %v2287, 0.5
      %v2320 = vsub.f32 %v2096, %v2161
      %v2321 = vsub.f32 %v2097, %v2163
      %v2322 = vsub.f32 %v2098, %v2165
      %v2323 = vsub.f32 %v2099, %v2167
      %v2324 = vsub.f32 %v2100, %v2169
      %v2325 = vsub.f32 %v2101, %v2171
      %v2326 = vsub.f32 %v2102, %v2173
      %v2327 = vsub.f32 %v2103, %v2175
      %v2328 = vsub.f32 %v2104, %v2177
      %v2329 = vsub.f32 %v2105, %v2179
      %v2330 = vsub.f32 %v2106, %v2181
      %v2331 = vsub.f32 %v2107, %v2183
      %v2332 = vsub.f32 %v2108, %v2185
      %v2333 = vsub.f32 %v2109, %v2187
      %v2334 = vsub.f32 %v2110, %v2189
      %v2335 = vsub.f32 %v2111, %v2191
      %v2336 = vsub.f32 %v2112, %v2193
      %v2337 = vsub.f32 %v2113, %v2195
      %v2338 = vsub.f32 %v2114, %v2197
      %v2339 = vsub.f32 %v2115, %v2199
      %v2340 = vsub.f32 %v2116, %v2201
      %v2341 = vsub.f32 %v2117, %v2203
      %v2342 = vsub.f32 %v2118, %v2205
      %v2343 = vsub.f32 %v2119, %v2207
      %v2344 = vsub.f32 %v2120, %v2209
      %v2345 = vsub.f32 %v2121, %v2211
      %v2346 = vsub.f32 %v2122, %v2213
      %v2347 = vsub.f32 %v2123, %v2215
      %v2348 = vsub.f32 %v2124, %v2217
      %v2349 = vsub.f32 %v2125, %v2219
      %v2350 = vsub.f32 %v2126, %v2221
      %v2351 = vsub.f32 %v2127, %v2223
      %v2352 = vmul.f32 %v2320, 0.5
      %v2353 = vmul.f32 %v2321, 0.5
      %v2354 = vmul.f32 %v2322, 0.5
      %v2355 = vmul.f32 %v2323, 0.5
      %v2356 = vmul.f32 %v2324, 0.5
      %v2357 = vmul.f32 %v2325, 0.5
      %v2358 = vmul.f32 %v2326, 0.5
      %v2359 = vmul.f32 %v2327, 0.5
      %v2360 = vmul.f32 %v2328, 0.5
      %v2361 = vmul.f32 %v2329, 0.5
      %v2362 = vmul.f32 %v2330, 0.5
      %v2363 = vmul.f32 %v2331, 0.5
      %v2364 = vmul.f32 %v2332, 0.5
      %v2365 = vmul.f32 %v2333, 0.5
      %v2366 = vmul.f32 %v2334, 0.5
      %v2367 = vmul.f32 %v2335, 0.5
      %v2368 = vmul.f32 %v2336, 0.5
      %v2369 = vmul.f32 %v2337, 0.5
      %v2370 = vmul.f32 %v2338, 0.5
      %v2371 = vmul.f32 %v2339, 0.5
      %v2372 = vmul.f32 %v2340, 0.5
      %v2373 = vmul.f32 %v2341, 0.5
      %v2374 = vmul.f32 %v2342, 0.5
      %v2375 = vmul.f32 %v2343, 0.5
      %v2376 = vmul.f32 %v2344, 0.5
      %v2377 = vmul.f32 %v2345, 0.5
      %v2378 = vmul.f32 %v2346, 0.5
      %v2379 = vmul.f32 %v2347, 0.5
      %v2380 = vmul.f32 %v2348, 0.5
      %v2381 = vmul.f32 %v2349, 0.5
      %v2382 = vmul.f32 %v2350, 0.5
      %v2383 = vmul.f32 %v2351, 0.5
      %2416 = vrot.lane.b32.xlu0 %v2288, 120
      %v2417 = vpop.permute.xlu0 %2416
      %2418 = vrot.lane.b32.xlu0 %v2289, 120
      %v2419 = vpop.permute.xlu0 %2418
      %2420 = vrot.lane.b32.xlu0 %v2290, 120
      %v2421 = vpop.permute.xlu0 %2420
      %2422 = vrot.lane.b32.xlu0 %v2291, 120
      %v2423 = vpop.permute.xlu0 %2422
      %2424 = vrot.lane.b32.xlu0 %v2292, 120
      %v2425 = vpop.permute.xlu0 %2424
      %2426 = vrot.lane.b32.xlu0 %v2293, 120
      %v2427 = vpop.permute.xlu0 %2426
      %2428 = vrot.lane.b32.xlu0 %v2294, 120
      %v2429 = vpop.permute.xlu0 %2428
      %2430 = vrot.lane.b32.xlu0 %v2295, 120
      %v2431 = vpop.permute.xlu0 %2430
      %2432 = vrot.lane.b32.xlu0 %v2296, 120
      %v2433 = vpop.permute.xlu0 %2432
      %2434 = vrot.lane.b32.xlu0 %v2297, 120
      %v2435 = vpop.permute.xlu0 %2434
      %2436 = vrot.lane.b32.xlu0 %v2298, 120
      %v2437 = vpop.permute.xlu0 %2436
      %2438 = vrot.lane.b32.xlu0 %v2299, 120
      %v2439 = vpop.permute.xlu0 %2438
      %2440 = vrot.lane.b32.xlu0 %v2300, 120
      %v2441 = vpop.permute.xlu0 %2440
      %2442 = vrot.lane.b32.xlu0 %v2301, 120
      %v2443 = vpop.permute.xlu0 %2442
      %2444 = vrot.lane.b32.xlu0 %v2302, 120
      %v2445 = vpop.permute.xlu0 %2444
      %2446 = vrot.lane.b32.xlu0 %v2303, 120
      %v2447 = vpop.permute.xlu0 %2446
      %2448 = vrot.lane.b32.xlu0 %v2304, 120
      %v2449 = vpop.permute.xlu0 %2448
      %2450 = vrot.lane.b32.xlu0 %v2305, 120
      %v2451 = vpop.permute.xlu0 %2450
      %2452 = vrot.lane.b32.xlu0 %v2306, 120
      %v2453 = vpop.permute.xlu0 %2452
      %2454 = vrot.lane.b32.xlu0 %v2307, 120
      %v2455 = vpop.permute.xlu0 %2454
      %2456 = vrot.lane.b32.xlu0 %v2308, 120
      %v2457 = vpop.permute.xlu0 %2456
      %2458 = vrot.lane.b32.xlu0 %v2309, 120
      %v2459 = vpop.permute.xlu0 %2458
      %2460 = vrot.lane.b32.xlu0 %v2310, 120
      %v2461 = vpop.permute.xlu0 %2460
      %2462 = vrot.lane.b32.xlu0 %v2311, 120
      %v2463 = vpop.permute.xlu0 %2462
      %2464 = vrot.lane.b32.xlu0 %v2312, 120
      %v2465 = vpop.permute.xlu0 %2464
      %2466 = vrot.lane.b32.xlu0 %v2313, 120
      %v2467 = vpop.permute.xlu0 %2466
      %2468 = vrot.lane.b32.xlu0 %v2314, 120
      %v2469 = vpop.permute.xlu0 %2468
      %2470 = vrot.lane.b32.xlu0 %v2315, 120
      %v2471 = vpop.permute.xlu0 %2470
      %2472 = vrot.lane.b32.xlu0 %v2316, 120
      %v2473 = vpop.permute.xlu0 %2472
      %2474 = vrot.lane.b32.xlu0 %v2317, 120
      %v2475 = vpop.permute.xlu0 %2474
      %2476 = vrot.lane.b32.xlu0 %v2318, 120
      %v2477 = vpop.permute.xlu0 %2476
      %2478 = vrot.lane.b32.xlu0 %v2319, 120
      %v2479 = vpop.permute.xlu0 %2478
      %v2512 = vadd.f32 %v2288, %v2417
      %v2513 = vadd.f32 %v2289, %v2419
      %v2514 = vadd.f32 %v2290, %v2421
      %v2515 = vadd.f32 %v2291, %v2423
      %v2516 = vadd.f32 %v2292, %v2425
      %v2517 = vadd.f32 %v2293, %v2427
      %v2518 = vadd.f32 %v2294, %v2429
      %v2519 = vadd.f32 %v2295, %v2431
      %v2520 = vadd.f32 %v2296, %v2433
      %v2521 = vadd.f32 %v2297, %v2435
      %v2522 = vadd.f32 %v2298, %v2437
      %v2523 = vadd.f32 %v2299, %v2439
      %v2524 = vadd.f32 %v2300, %v2441
      %v2525 = vadd.f32 %v2301, %v2443
      %v2526 = vadd.f32 %v2302, %v2445
      %v2527 = vadd.f32 %v2303, %v2447
      %v2528 = vadd.f32 %v2304, %v2449
      %v2529 = vadd.f32 %v2305, %v2451
      %v2530 = vadd.f32 %v2306, %v2453
      %v2531 = vadd.f32 %v2307, %v2455
      %v2532 = vadd.f32 %v2308, %v2457
      %v2533 = vadd.f32 %v2309, %v2459
      %v2534 = vadd.f32 %v2310, %v2461
      %v2535 = vadd.f32 %v2311, %v2463
      %v2536 = vadd.f32 %v2312, %v2465
      %v2537 = vadd.f32 %v2313, %v2467
      %v2538 = vadd.f32 %v2314, %v2469
      %v2539 = vadd.f32 %v2315, %v2471
      %v2540 = vadd.f32 %v2316, %v2473
      %v2541 = vadd.f32 %v2317, %v2475
      %v2542 = vadd.f32 %v2318, %v2477
      %v2543 = vadd.f32 %v2319, %v2479
      %v2544 = vsub.f32 %v2288, %v2417
      %v2545 = vsub.f32 %v2289, %v2419
      %v2546 = vsub.f32 %v2290, %v2421
      %v2547 = vsub.f32 %v2291, %v2423
      %v2548 = vsub.f32 %v2292, %v2425
      %v2549 = vsub.f32 %v2293, %v2427
      %v2550 = vsub.f32 %v2294, %v2429
      %v2551 = vsub.f32 %v2295, %v2431
      %v2552 = vsub.f32 %v2296, %v2433
      %v2553 = vsub.f32 %v2297, %v2435
      %v2554 = vsub.f32 %v2298, %v2437
      %v2555 = vsub.f32 %v2299, %v2439
      %v2556 = vsub.f32 %v2300, %v2441
      %v2557 = vsub.f32 %v2301, %v2443
      %v2558 = vsub.f32 %v2302, %v2445
      %v2559 = vsub.f32 %v2303, %v2447
      %v2560 = vsub.f32 %v2304, %v2449
      %v2561 = vsub.f32 %v2305, %v2451
      %v2562 = vsub.f32 %v2306, %v2453
      %v2563 = vsub.f32 %v2307, %v2455
      %v2564 = vsub.f32 %v2308, %v2457
      %v2565 = vsub.f32 %v2309, %v2459
      %v2566 = vsub.f32 %v2310, %v2461
      %v2567 = vsub.f32 %v2311, %v2463
      %v2568 = vsub.f32 %v2312, %v2465
      %v2569 = vsub.f32 %v2313, %v2467
      %v2570 = vsub.f32 %v2314, %v2469
      %v2571 = vsub.f32 %v2315, %v2471
      %v2572 = vsub.f32 %v2316, %v2473
      %v2573 = vsub.f32 %v2317, %v2475
      %v2574 = vsub.f32 %v2318, %v2477
      %v2575 = vsub.f32 %v2319, %v2479
      %2608 = vrot.lane.b32.xlu0 %v2352, 120
      %v2609 = vpop.permute.xlu0 %2608
      %2610 = vrot.lane.b32.xlu0 %v2353, 120
      %v2611 = vpop.permute.xlu0 %2610
      %2612 = vrot.lane.b32.xlu0 %v2354, 120
      %v2613 = vpop.permute.xlu0 %2612
      %2614 = vrot.lane.b32.xlu0 %v2355, 120
      %v2615 = vpop.permute.xlu0 %2614
      %2616 = vrot.lane.b32.xlu0 %v2356, 120
      %v2617 = vpop.permute.xlu0 %2616
      %2618 = vrot.lane.b32.xlu0 %v2357, 120
      %v2619 = vpop.permute.xlu0 %2618
      %2620 = vrot.lane.b32.xlu0 %v2358, 120
      %v2621 = vpop.permute.xlu0 %2620
      %2622 = vrot.lane.b32.xlu0 %v2359, 120
      %v2623 = vpop.permute.xlu0 %2622
      %2624 = vrot.lane.b32.xlu0 %v2360, 120
      %v2625 = vpop.permute.xlu0 %2624
      %2626 = vrot.lane.b32.xlu0 %v2361, 120
      %v2627 = vpop.permute.xlu0 %2626
      %2628 = vrot.lane.b32.xlu0 %v2362, 120
      %v2629 = vpop.permute.xlu0 %2628
      %2630 = vrot.lane.b32.xlu0 %v2363, 120
      %v2631 = vpop.permute.xlu0 %2630
      %2632 = vrot.lane.b32.xlu0 %v2364, 120
      %v2633 = vpop.permute.xlu0 %2632
      %2634 = vrot.lane.b32.xlu0 %v2365, 120
      %v2635 = vpop.permute.xlu0 %2634
      %2636 = vrot.lane.b32.xlu0 %v2366, 120
      %v2637 = vpop.permute.xlu0 %2636
      %2638 = vrot.lane.b32.xlu0 %v2367, 120
      %v2639 = vpop.permute.xlu0 %2638
      %2640 = vrot.lane.b32.xlu0 %v2368, 120
      %v2641 = vpop.permute.xlu0 %2640
      %2642 = vrot.lane.b32.xlu0 %v2369, 120
      %v2643 = vpop.permute.xlu0 %2642
      %2644 = vrot.lane.b32.xlu0 %v2370, 120
      %v2645 = vpop.permute.xlu0 %2644
      %2646 = vrot.lane.b32.xlu0 %v2371, 120
      %v2647 = vpop.permute.xlu0 %2646
      %2648 = vrot.lane.b32.xlu0 %v2372, 120
      %v2649 = vpop.permute.xlu0 %2648
      %2650 = vrot.lane.b32.xlu0 %v2373, 120
      %v2651 = vpop.permute.xlu0 %2650
      %2652 = vrot.lane.b32.xlu0 %v2374, 120
      %v2653 = vpop.permute.xlu0 %2652
      %2654 = vrot.lane.b32.xlu0 %v2375, 120
      %v2655 = vpop.permute.xlu0 %2654
      %2656 = vrot.lane.b32.xlu0 %v2376, 120
      %v2657 = vpop.permute.xlu0 %2656
      %2658 = vrot.lane.b32.xlu0 %v2377, 120
      %v2659 = vpop.permute.xlu0 %2658
      %2660 = vrot.lane.b32.xlu0 %v2378, 120
      %v2661 = vpop.permute.xlu0 %2660
      %2662 = vrot.lane.b32.xlu0 %v2379, 120
      %v2663 = vpop.permute.xlu0 %2662
      %2664 = vrot.lane.b32.xlu0 %v2380, 120
      %v2665 = vpop.permute.xlu0 %2664
      %2666 = vrot.lane.b32.xlu0 %v2381, 120
      %v2667 = vpop.permute.xlu0 %2666
      %2668 = vrot.lane.b32.xlu0 %v2382, 120
      %v2669 = vpop.permute.xlu0 %2668
      %2670 = vrot.lane.b32.xlu0 %v2383, 120
      %v2671 = vpop.permute.xlu0 %2670
      %v2704 = vadd.f32 %v2352, %v2609
      %v2705 = vadd.f32 %v2353, %v2611
      %v2706 = vadd.f32 %v2354, %v2613
      %v2707 = vadd.f32 %v2355, %v2615
      %v2708 = vadd.f32 %v2356, %v2617
      %v2709 = vadd.f32 %v2357, %v2619
      %v2710 = vadd.f32 %v2358, %v2621
      %v2711 = vadd.f32 %v2359, %v2623
      %v2712 = vadd.f32 %v2360, %v2625
      %v2713 = vadd.f32 %v2361, %v2627
      %v2714 = vadd.f32 %v2362, %v2629
      %v2715 = vadd.f32 %v2363, %v2631
      %v2716 = vadd.f32 %v2364, %v2633
      %v2717 = vadd.f32 %v2365, %v2635
      %v2718 = vadd.f32 %v2366, %v2637
      %v2719 = vadd.f32 %v2367, %v2639
      %v2720 = vadd.f32 %v2368, %v2641
      %v2721 = vadd.f32 %v2369, %v2643
      %v2722 = vadd.f32 %v2370, %v2645
      %v2723 = vadd.f32 %v2371, %v2647
      %v2724 = vadd.f32 %v2372, %v2649
      %v2725 = vadd.f32 %v2373, %v2651
      %v2726 = vadd.f32 %v2374, %v2653
      %v2727 = vadd.f32 %v2375, %v2655
      %v2728 = vadd.f32 %v2376, %v2657
      %v2729 = vadd.f32 %v2377, %v2659
      %v2730 = vadd.f32 %v2378, %v2661
      %v2731 = vadd.f32 %v2379, %v2663
      %v2732 = vadd.f32 %v2380, %v2665
      %v2733 = vadd.f32 %v2381, %v2667
      %v2734 = vadd.f32 %v2382, %v2669
      %v2735 = vadd.f32 %v2383, %v2671
      %v2736 = vsub.f32 %v2352, %v2609
      %v2737 = vsub.f32 %v2353, %v2611
      %v2738 = vsub.f32 %v2354, %v2613
      %v2739 = vsub.f32 %v2355, %v2615
      %v2740 = vsub.f32 %v2356, %v2617
      %v2741 = vsub.f32 %v2357, %v2619
      %v2742 = vsub.f32 %v2358, %v2621
      %v2743 = vsub.f32 %v2359, %v2623
      %v2744 = vsub.f32 %v2360, %v2625
      %v2745 = vsub.f32 %v2361, %v2627
      %v2746 = vsub.f32 %v2362, %v2629
      %v2747 = vsub.f32 %v2363, %v2631
      %v2748 = vsub.f32 %v2364, %v2633
      %v2749 = vsub.f32 %v2365, %v2635
      %v2750 = vsub.f32 %v2366, %v2637
      %v2751 = vsub.f32 %v2367, %v2639
      %v2752 = vsub.f32 %v2368, %v2641
      %v2753 = vsub.f32 %v2369, %v2643
      %v2754 = vsub.f32 %v2370, %v2645
      %v2755 = vsub.f32 %v2371, %v2647
      %v2756 = vsub.f32 %v2372, %v2649
      %v2757 = vsub.f32 %v2373, %v2651
      %v2758 = vsub.f32 %v2374, %v2653
      %v2759 = vsub.f32 %v2375, %v2655
      %v2760 = vsub.f32 %v2376, %v2657
      %v2761 = vsub.f32 %v2377, %v2659
      %v2762 = vsub.f32 %v2378, %v2661
      %v2763 = vsub.f32 %v2379, %v2663
      %v2764 = vsub.f32 %v2380, %v2665
      %v2765 = vsub.f32 %v2381, %v2667
      %v2766 = vsub.f32 %v2382, %v2669
      %v2767 = vsub.f32 %v2383, %v2671
      %2800 = vrot.lane.b32.xlu0 %v2544, 4
      %v2801 = vpop.permute.xlu0 %2800
      %2802 = vrot.lane.b32.xlu0 %v2545, 4
      %v2803 = vpop.permute.xlu0 %2802
      %2804 = vrot.lane.b32.xlu0 %v2546, 4
      %v2805 = vpop.permute.xlu0 %2804
      %2806 = vrot.lane.b32.xlu0 %v2547, 4
      %v2807 = vpop.permute.xlu0 %2806
      %2808 = vrot.lane.b32.xlu0 %v2548, 4
      %v2809 = vpop.permute.xlu0 %2808
      %2810 = vrot.lane.b32.xlu0 %v2549, 4
      %v2811 = vpop.permute.xlu0 %2810
      %2812 = vrot.lane.b32.xlu0 %v2550, 4
      %v2813 = vpop.permute.xlu0 %2812
      %2814 = vrot.lane.b32.xlu0 %v2551, 4
      %v2815 = vpop.permute.xlu0 %2814
      %2816 = vrot.lane.b32.xlu0 %v2552, 4
      %v2817 = vpop.permute.xlu0 %2816
      %2818 = vrot.lane.b32.xlu0 %v2553, 4
      %v2819 = vpop.permute.xlu0 %2818
      %2820 = vrot.lane.b32.xlu0 %v2554, 4
      %v2821 = vpop.permute.xlu0 %2820
      %2822 = vrot.lane.b32.xlu0 %v2555, 4
      %v2823 = vpop.permute.xlu0 %2822
      %2824 = vrot.lane.b32.xlu0 %v2556, 4
      %v2825 = vpop.permute.xlu0 %2824
      %2826 = vrot.lane.b32.xlu0 %v2557, 4
      %v2827 = vpop.permute.xlu0 %2826
      %2828 = vrot.lane.b32.xlu0 %v2558, 4
      %v2829 = vpop.permute.xlu0 %2828
      %2830 = vrot.lane.b32.xlu0 %v2559, 4
      %v2831 = vpop.permute.xlu0 %2830
      %2832 = vrot.lane.b32.xlu0 %v2560, 4
      %v2833 = vpop.permute.xlu0 %2832
      %2834 = vrot.lane.b32.xlu0 %v2561, 4
      %v2835 = vpop.permute.xlu0 %2834
      %2836 = vrot.lane.b32.xlu0 %v2562, 4
      %v2837 = vpop.permute.xlu0 %2836
      %2838 = vrot.lane.b32.xlu0 %v2563, 4
      %v2839 = vpop.permute.xlu0 %2838
      %2840 = vrot.lane.b32.xlu0 %v2564, 4
      %v2841 = vpop.permute.xlu0 %2840
      %2842 = vrot.lane.b32.xlu0 %v2565, 4
      %v2843 = vpop.permute.xlu0 %2842
      %2844 = vrot.lane.b32.xlu0 %v2566, 4
      %v2845 = vpop.permute.xlu0 %2844
      %2846 = vrot.lane.b32.xlu0 %v2567, 4
      %v2847 = vpop.permute.xlu0 %2846
      %2848 = vrot.lane.b32.xlu0 %v2568, 4
      %v2849 = vpop.permute.xlu0 %2848
      %2850 = vrot.lane.b32.xlu0 %v2569, 4
      %v2851 = vpop.permute.xlu0 %2850
      %2852 = vrot.lane.b32.xlu0 %v2570, 4
      %v2853 = vpop.permute.xlu0 %2852
      %2854 = vrot.lane.b32.xlu0 %v2571, 4
      %v2855 = vpop.permute.xlu0 %2854
      %2856 = vrot.lane.b32.xlu0 %v2572, 4
      %v2857 = vpop.permute.xlu0 %2856
      %2858 = vrot.lane.b32.xlu0 %v2573, 4
      %v2859 = vpop.permute.xlu0 %2858
      %2860 = vrot.lane.b32.xlu0 %v2574, 4
      %v2861 = vpop.permute.xlu0 %2860
      %2862 = vrot.lane.b32.xlu0 %v2575, 4
      %v2863 = vpop.permute.xlu0 %2862
      %2928 = vrot.lane.b32.xlu0 %v2704, 8
      %v2929 = vpop.permute.xlu0 %2928
      %2930 = vrot.lane.b32.xlu0 %v2705, 8
      %v2931 = vpop.permute.xlu0 %2930
      %2932 = vrot.lane.b32.xlu0 %v2706, 8
      %v2933 = vpop.permute.xlu0 %2932
      %2934 = vrot.lane.b32.xlu0 %v2707, 8
      %v2935 = vpop.permute.xlu0 %2934
      %2936 = vrot.lane.b32.xlu0 %v2708, 8
      %v2937 = vpop.permute.xlu0 %2936
      %2938 = vrot.lane.b32.xlu0 %v2709, 8
      %v2939 = vpop.permute.xlu0 %2938
      %2940 = vrot.lane.b32.xlu0 %v2710, 8
      %v2941 = vpop.permute.xlu0 %2940
      %2942 = vrot.lane.b32.xlu0 %v2711, 8
      %v2943 = vpop.permute.xlu0 %2942
      %2944 = vrot.lane.b32.xlu0 %v2712, 8
      %v2945 = vpop.permute.xlu0 %2944
      %2946 = vrot.lane.b32.xlu0 %v2713, 8
      %v2947 = vpop.permute.xlu0 %2946
      %2948 = vrot.lane.b32.xlu0 %v2714, 8
      %v2949 = vpop.permute.xlu0 %2948
      %2950 = vrot.lane.b32.xlu0 %v2715, 8
      %v2951 = vpop.permute.xlu0 %2950
      %2952 = vrot.lane.b32.xlu0 %v2716, 8
      %v2953 = vpop.permute.xlu0 %2952
      %2954 = vrot.lane.b32.xlu0 %v2717, 8
      %v2955 = vpop.permute.xlu0 %2954
      %2956 = vrot.lane.b32.xlu0 %v2718, 8
      %v2957 = vpop.permute.xlu0 %2956
      %2958 = vrot.lane.b32.xlu0 %v2719, 8
      %v2959 = vpop.permute.xlu0 %2958
      %2960 = vrot.lane.b32.xlu0 %v2720, 8
      %v2961 = vpop.permute.xlu0 %2960
      %2962 = vrot.lane.b32.xlu0 %v2721, 8
      %v2963 = vpop.permute.xlu0 %2962
      %2964 = vrot.lane.b32.xlu0 %v2722, 8
      %v2965 = vpop.permute.xlu0 %2964
      %2966 = vrot.lane.b32.xlu0 %v2723, 8
      %v2967 = vpop.permute.xlu0 %2966
      %2968 = vrot.lane.b32.xlu0 %v2724, 8
      %v2969 = vpop.permute.xlu0 %2968
      %2970 = vrot.lane.b32.xlu0 %v2725, 8
      %v2971 = vpop.permute.xlu0 %2970
      %2972 = vrot.lane.b32.xlu0 %v2726, 8
      %v2973 = vpop.permute.xlu0 %2972
      %2974 = vrot.lane.b32.xlu0 %v2727, 8
      %v2975 = vpop.permute.xlu0 %2974
      %2976 = vrot.lane.b32.xlu0 %v2728, 8
      %v2977 = vpop.permute.xlu0 %2976
      %2978 = vrot.lane.b32.xlu0 %v2729, 8
      %v2979 = vpop.permute.xlu0 %2978
      %2980 = vrot.lane.b32.xlu0 %v2730, 8
      %v2981 = vpop.permute.xlu0 %2980
      %2982 = vrot.lane.b32.xlu0 %v2731, 8
      %v2983 = vpop.permute.xlu0 %2982
      %2984 = vrot.lane.b32.xlu0 %v2732, 8
      %v2985 = vpop.permute.xlu0 %2984
      %2986 = vrot.lane.b32.xlu0 %v2733, 8
      %v2987 = vpop.permute.xlu0 %2986
      %2988 = vrot.lane.b32.xlu0 %v2734, 8
      %v2989 = vpop.permute.xlu0 %2988
      %2990 = vrot.lane.b32.xlu0 %v2735, 8
      %v2991 = vpop.permute.xlu0 %2990
      %3056 = vrot.lane.b32.xlu0 %v2736, 12
      %v3057 = vpop.permute.xlu0 %3056
      %3058 = vrot.lane.b32.xlu0 %v2737, 12
      %v3059 = vpop.permute.xlu0 %3058
      %3060 = vrot.lane.b32.xlu0 %v2738, 12
      %v3061 = vpop.permute.xlu0 %3060
      %3062 = vrot.lane.b32.xlu0 %v2739, 12
      %v3063 = vpop.permute.xlu0 %3062
      %3064 = vrot.lane.b32.xlu0 %v2740, 12
      %v3065 = vpop.permute.xlu0 %3064
      %3066 = vrot.lane.b32.xlu0 %v2741, 12
      %v3067 = vpop.permute.xlu0 %3066
      %3068 = vrot.lane.b32.xlu0 %v2742, 12
      %v3069 = vpop.permute.xlu0 %3068
      %3070 = vrot.lane.b32.xlu0 %v2743, 12
      %v3071 = vpop.permute.xlu0 %3070
      %3072 = vrot.lane.b32.xlu0 %v2744, 12
      %v3073 = vpop.permute.xlu0 %3072
      %3074 = vrot.lane.b32.xlu0 %v2745, 12
      %v3075 = vpop.permute.xlu0 %3074
      %3076 = vrot.lane.b32.xlu0 %v2746, 12
      %v3077 = vpop.permute.xlu0 %3076
      %3078 = vrot.lane.b32.xlu0 %v2747, 12
      %v3079 = vpop.permute.xlu0 %3078
      %3080 = vrot.lane.b32.xlu0 %v2748, 12
      %v3081 = vpop.permute.xlu0 %3080
      %3082 = vrot.lane.b32.xlu0 %v2749, 12
      %v3083 = vpop.permute.xlu0 %3082
      %3084 = vrot.lane.b32.xlu0 %v2750, 12
      %v3085 = vpop.permute.xlu0 %3084
      %3086 = vrot.lane.b32.xlu0 %v2751, 12
      %v3087 = vpop.permute.xlu0 %3086
      %3088 = vrot.lane.b32.xlu0 %v2752, 12
      %v3089 = vpop.permute.xlu0 %3088
      %3090 = vrot.lane.b32.xlu0 %v2753, 12
      %v3091 = vpop.permute.xlu0 %3090
      %3092 = vrot.lane.b32.xlu0 %v2754, 12
      %v3093 = vpop.permute.xlu0 %3092
      %3094 = vrot.lane.b32.xlu0 %v2755, 12
      %v3095 = vpop.permute.xlu0 %3094
      %3096 = vrot.lane.b32.xlu0 %v2756, 12
      %v3097 = vpop.permute.xlu0 %3096
      %3098 = vrot.lane.b32.xlu0 %v2757, 12
      %v3099 = vpop.permute.xlu0 %3098
      %3100 = vrot.lane.b32.xlu0 %v2758, 12
      %v3101 = vpop.permute.xlu0 %3100
      %3102 = vrot.lane.b32.xlu0 %v2759, 12
      %v3103 = vpop.permute.xlu0 %3102
      %3104 = vrot.lane.b32.xlu0 %v2760, 12
      %v3105 = vpop.permute.xlu0 %3104
      %3106 = vrot.lane.b32.xlu0 %v2761, 12
      %v3107 = vpop.permute.xlu0 %3106
      %3108 = vrot.lane.b32.xlu0 %v2762, 12
      %v3109 = vpop.permute.xlu0 %3108
      %3110 = vrot.lane.b32.xlu0 %v2763, 12
      %v3111 = vpop.permute.xlu0 %3110
      %3112 = vrot.lane.b32.xlu0 %v2764, 12
      %v3113 = vpop.permute.xlu0 %3112
      %3114 = vrot.lane.b32.xlu0 %v2765, 12
      %v3115 = vpop.permute.xlu0 %3114
      %3116 = vrot.lane.b32.xlu0 %v2766, 12
      %v3117 = vpop.permute.xlu0 %3116
      %3118 = vrot.lane.b32.xlu0 %v2767, 12
      %v3119 = vpop.permute.xlu0 %3118
      %v3152 = vsel %vm979, %v2512, %v2801
      %v3153 = vsel %vm979, %v2513, %v2803
      %v3154 = vsel %vm979, %v2514, %v2805
      %v3155 = vsel %vm979, %v2515, %v2807
      %v3156 = vsel %vm979, %v2516, %v2809
      %v3157 = vsel %vm979, %v2517, %v2811
      %v3158 = vsel %vm979, %v2518, %v2813
      %v3159 = vsel %vm979, %v2519, %v2815
      %v3160 = vsel %vm979, %v2520, %v2817
      %v3161 = vsel %vm979, %v2521, %v2819
      %v3162 = vsel %vm979, %v2522, %v2821
      %v3163 = vsel %vm979, %v2523, %v2823
      %v3164 = vsel %vm979, %v2524, %v2825
      %v3165 = vsel %vm979, %v2525, %v2827
      %v3166 = vsel %vm979, %v2526, %v2829
      %v3167 = vsel %vm979, %v2527, %v2831
      %v3168 = vsel %vm979, %v2528, %v2833
      %v3169 = vsel %vm979, %v2529, %v2835
      %v3170 = vsel %vm979, %v2530, %v2837
      %v3171 = vsel %vm979, %v2531, %v2839
      %v3172 = vsel %vm979, %v2532, %v2841
      %v3173 = vsel %vm979, %v2533, %v2843
      %v3174 = vsel %vm979, %v2534, %v2845
      %v3175 = vsel %vm979, %v2535, %v2847
      %v3176 = vsel %vm979, %v2536, %v2849
      %v3177 = vsel %vm979, %v2537, %v2851
      %v3178 = vsel %vm979, %v2538, %v2853
      %v3179 = vsel %vm979, %v2539, %v2855
      %v3180 = vsel %vm979, %v2540, %v2857
      %v3181 = vsel %vm979, %v2541, %v2859
      %v3182 = vsel %vm979, %v2542, %v2861
      %v3183 = vsel %vm979, %v2543, %v2863
      %v3184 = vsel %vm1012, %v3152, %v2929
      %v3185 = vsel %vm1012, %v3153, %v2931
      %v3186 = vsel %vm1012, %v3154, %v2933
      %v3187 = vsel %vm1012, %v3155, %v2935
      %v3188 = vsel %vm1012, %v3156, %v2937
      %v3189 = vsel %vm1012, %v3157, %v2939
      %v3190 = vsel %vm1012, %v3158, %v2941
      %v3191 = vsel %vm1012, %v3159, %v2943
      %v3192 = vsel %vm1012, %v3160, %v2945
      %v3193 = vsel %vm1012, %v3161, %v2947
      %v3194 = vsel %vm1012, %v3162, %v2949
      %v3195 = vsel %vm1012, %v3163, %v2951
      %v3196 = vsel %vm1012, %v3164, %v2953
      %v3197 = vsel %vm1012, %v3165, %v2955
      %v3198 = vsel %vm1012, %v3166, %v2957
      %v3199 = vsel %vm1012, %v3167, %v2959
      %v3200 = vsel %vm1012, %v3168, %v2961
      %v3201 = vsel %vm1012, %v3169, %v2963
      %v3202 = vsel %vm1012, %v3170, %v2965
      %v3203 = vsel %vm1012, %v3171, %v2967
      %v3204 = vsel %vm1012, %v3172, %v2969
      %v3205 = vsel %vm1012, %v3173, %v2971
      %v3206 = vsel %vm1012, %v3174, %v2973
      %v3207 = vsel %vm1012, %v3175, %v2975
      %v3208 = vsel %vm1012, %v3176, %v2977
      %v3209 = vsel %vm1012, %v3177, %v2979
      %v3210 = vsel %vm1012, %v3178, %v2981
      %v3211 = vsel %vm1012, %v3179, %v2983
      %v3212 = vsel %vm1012, %v3180, %v2985
      %v3213 = vsel %vm1012, %v3181, %v2987
      %v3214 = vsel %vm1012, %v3182, %v2989
      %v3215 = vsel %vm1012, %v3183, %v2991
      %v3216 = vsel %vm1045, %v3184, %v3057
      %v3217 = vsel %vm1045, %v3185, %v3059
      %v3218 = vsel %vm1045, %v3186, %v3061
      %v3219 = vsel %vm1045, %v3187, %v3063
      %v3220 = vsel %vm1045, %v3188, %v3065
      %v3221 = vsel %vm1045, %v3189, %v3067
      %v3222 = vsel %vm1045, %v3190, %v3069
      %v3223 = vsel %vm1045, %v3191, %v3071
      %v3224 = vsel %vm1045, %v3192, %v3073
      %v3225 = vsel %vm1045, %v3193, %v3075
      %v3226 = vsel %vm1045, %v3194, %v3077
      %v3227 = vsel %vm1045, %v3195, %v3079
      %v3228 = vsel %vm1045, %v3196, %v3081
      %v3229 = vsel %vm1045, %v3197, %v3083
      %v3230 = vsel %vm1045, %v3198, %v3085
      %v3231 = vsel %vm1045, %v3199, %v3087
      %v3232 = vsel %vm1045, %v3200, %v3089
      %v3233 = vsel %vm1045, %v3201, %v3091
      %v3234 = vsel %vm1045, %v3202, %v3093
      %v3235 = vsel %vm1045, %v3203, %v3095
      %v3236 = vsel %vm1045, %v3204, %v3097
      %v3237 = vsel %vm1045, %v3205, %v3099
      %v3238 = vsel %vm1045, %v3206, %v3101
      %v3239 = vsel %vm1045, %v3207, %v3103
      %v3240 = vsel %vm1045, %v3208, %v3105
      %v3241 = vsel %vm1045, %v3209, %v3107
      %v3242 = vsel %vm1045, %v3210, %v3109
      %v3243 = vsel %vm1045, %v3211, %v3111
      %v3244 = vsel %vm1045, %v3212, %v3113
      %v3245 = vsel %vm1045, %v3213, %v3115
      %v3246 = vsel %vm1045, %v3214, %v3117
      %v3247 = vsel %vm1045, %v3215, %v3119
      %3248 = vst.msk [vmem:[%s251] sm:$0xff] %vm1078, %v3216
      %3249 = vst.msk [vmem:[%s251 + $0x8] sm:$0xff] %vm1078, %v3217
      %3250 = vst.msk [vmem:[%s251 + $0x10] sm:$0xff] %vm1078, %v3218
      %3251 = vst.msk [vmem:[%s251 + $0x18] sm:$0xff] %vm1078, %v3219
      %3252 = vst.msk [vmem:[%s251 + $0x20] sm:$0xff] %vm1078, %v3220
      %3253 = vst.msk [vmem:[%s251 + $0x28] sm:$0xff] %vm1078, %v3221
      %3254 = vst.msk [vmem:[%s251 + $0x30] sm:$0xff] %vm1078, %v3222
      %3255 = vst.msk [vmem:[%s251 + $0x38] sm:$0xff] %vm1078, %v3223
      %3256 = vst.msk [vmem:[%s251 + $0x40] sm:$0xff] %vm1078, %v3224
      %3257 = vst.msk [vmem:[%s251 + $0x48] sm:$0xff] %vm1078, %v3225
      %3258 = vst.msk [vmem:[%s251 + $0x50] sm:$0xff] %vm1078, %v3226
      %3259 = vst.msk [vmem:[%s251 + $0x58] sm:$0xff] %vm1078, %v3227
      %3260 = vst.msk [vmem:[%s251 + $0x60] sm:$0xff] %vm1078, %v3228
      %3261 = vst.msk [vmem:[%s251 + $0x68] sm:$0xff] %vm1078, %v3229
      %3262 = vst.msk [vmem:[%s251 + $0x70] sm:$0xff] %vm1078, %v3230
      %3263 = vst.msk [vmem:[%s251 + $0x78] sm:$0xff] %vm1078, %v3231
      %3264 = vst.msk [vmem:[%s251 + $0x80] sm:$0xff] %vm1078, %v3232
      %3265 = vst.msk [vmem:[%s251 + $0x88] sm:$0xff] %vm1078, %v3233
      %3266 = vst.msk [vmem:[%s251 + $0x90] sm:$0xff] %vm1078, %v3234
      %3267 = vst.msk [vmem:[%s251 + $0x98] sm:$0xff] %vm1078, %v3235
      %3268 = vst.msk [vmem:[%s251 + $0xa0] sm:$0xff] %vm1078, %v3236
      %3269 = vst.msk [vmem:[%s251 + $0xa8] sm:$0xff] %vm1078, %v3237
      %3270 = vst.msk [vmem:[%s251 + $0xb0] sm:$0xff] %vm1078, %v3238
      %3271 = vst.msk [vmem:[%s251 + $0xb8] sm:$0xff] %vm1078, %v3239
      %3272 = vst.msk [vmem:[%s251 + $0xc0] sm:$0xff] %vm1078, %v3240
      %3273 = vst.msk [vmem:[%s251 + $0xc8] sm:$0xff] %vm1078, %v3241
      %3274 = vst.msk [vmem:[%s251 + $0xd0] sm:$0xff] %vm1078, %v3242
      %3275 = vst.msk [vmem:[%s251 + $0xd8] sm:$0xff] %vm1078, %v3243
      %3276 = vst.msk [vmem:[%s251 + $0xe0] sm:$0xff] %vm1078, %v3244
      %3277 = vst.msk [vmem:[%s251 + $0xe8] sm:$0xff] %vm1078, %v3245
      %3278 = vst.msk [vmem:[%s251 + $0xf0] sm:$0xff] %vm1078, %v3246
      %3279 = vst.msk [vmem:[%s251 + $0xf8] sm:$0xff] %vm1078, %v3247
      %p3280 = scmp.lt.s32.totalorder %s17, 1
      %s3281 = scalar_select %p3280, %s17, 1
      %s3282 = smul.addr %s3281, 32
      %s3283 = smul.addr %s3282, 8
      %s3284 = scalar_lea.vmem %s6, %s3283
      // Predicated region
      $region45: #{tpu_custom_call.1} parent=43 // pred_check
        %p3285 = pneg %p166
      $region46: #{tpu_custom_call.1} parent=43 // pred_check_branch
        %3287 = sbr.rel (%p3285) target = $region48
      $region47: #{tpu_custom_call.1} parent=43 // pred_region
        _
      $region48: #{tpu_custom_call.1} parent=43 // pred_fallthru
        _
    $region44: #{tpu_custom_call.1} parent=5 // pred_fallthru
      _
    %p3288 = scmp.le.s32.totalorder 2, %s12
    // Predicated region
    $region49: #{tpu_custom_call.1} parent=5 // pred_check
      %p3289 = pneg %p3288
    $region50: #{tpu_custom_call.1} parent=5 // pred_check_branch
      %3291 = sbr.rel (%p3289) target = $region52
    $region51: #{tpu_custom_call.1} parent=5 // pred_region
      %s3292 = ssub.s32 %s12, 2
      // Predicated region
      $region53: #{tpu_custom_call.1} parent=51 // pred_check
        %p3293 = pneg %p172
      $region54: #{tpu_custom_call.1} parent=51 // pred_check_branch
        %3295 = sbr.rel (%p3293) target = $region56
      $region55: #{tpu_custom_call.1} parent=51 // pred_region
        %p3296 = scmp.lt.s32.totalorder %s18, 1
        %s3297 = scalar_select %p3296, %s18, 1
        %s3298 = smul.addr %s3297, 32
        %s3299 = smul.addr %s3298, 8
        %s3300 = scalar_lea.vmem %s6, %s3299
      $region56: #{tpu_custom_call.1} parent=51 // pred_fallthru
        _
    $region52: #{tpu_custom_call.1} parent=5 // pred_fallthru
      _
  $region6: #{tpu_custom_call.1} parent=0 // loop_footer
    %s16 = sadd.s32 1, %s12
  $region7: #{tpu_custom_call.1} parent=0 // loop_footer_branch
    %11 = sbr.rel target = $region3
  $region8: #{tpu_custom_call.1} parent=0 // loop_exit
    _

</llo_original>
